<compile_context>
chip_gen: v5e
topology: v5e:2x2
jax: 0.10.0
libtpu: 0.0.40
codegen_flags: <defaults>
</compile_context>

<pallas_src>
import functools

import jax
import jax.numpy as jnp
from jax import lax
from jax.experimental import pallas as pl
from jax.experimental.pallas import tpu as pltpu

_BN_EPS = 1e-5


def _round_up(x, m):
    return (x + m - 1) // m * m


def _pick_vmem_limit(work_bytes):
    """Scoped-VMEM request from per-buffer accounting, capped below physical VMEM."""
    try:
        phys = int(getattr(pltpu.get_tpu_info(), "vmem_capacity_bytes", 0)) or (64 << 20)
    except Exception:
        phys = 64 << 20                      # conservative fallback (v7x per-TC VMEM)
    cap = int(phys * 0.85)                   # headroom for compiler scratch / semaphores
    return min(cap, max(int(1.3 * work_bytes), 32 << 20))


# ------------------------------ Pallas kernel ------------------------------ #
def _binconv_tap_kernel(taps, ho, wo, sc_tap, with_residual, *refs):
    """Direct binary conv: per-tap MXU matmuls on a resident phase-stacked image.

    x_ref holds one batch element's zero-padded, phase-decomposed image
    (1, P*Hq, Wq, Cin) in bf16.  For every kernel tap the (Ho, Wo, Cin) window is
    sliced out of VMEM (no HBM im2col), flattened to (Ho*Wo, Cin) and multiplied
    against resident +/-1 bf16 weights with f32 accumulation, then BN (alpha
    folded into the scale) + PReLU are applied.  Optionally fuses
    `out += residual` and the block's 1x1 shortcut (one centre-tap matmul).
    """
    it = iter(refs)
    x_ref = next(it)               # (1, P*Hq, Wq, Cin)  bf16, resident per batch elem
    w_ref = next(it)               # (KH*KW, Cin, Cpad)  bf16 sign(weight), resident
    sb_ref = next(it)              # (2, Cpad)           f32 [alpha*bn_scale ; bn_bias]
    a_ref = next(it)               # (1,)                f32 PReLU slope (SMEM)
    if sc_tap is not None:
        ws_ref = next(it)          # (Cin, Cpad)         bf16 shortcut sign(weight)
        sbs_ref = next(it)         # (2, Cpad)           f32 shortcut BN scale/bias
        as_ref = next(it)          # (1,)                f32 shortcut PReLU slope (SMEM)
    r_ref = next(it) if with_residual else None   # (1, Ho*Wo, Cpad) bf16 residual
    o_ref = next(it)               # (1, Ho*Wo, Cpad)    bf16
    id_ref = next(it) if sc_tap is not None else None

    cin = x_ref.shape[-1]

    def window(row0, col0):        # static offsets -> (Ho*Wo, Cin) bf16
        return x_ref[0, pl.ds(row0, ho), pl.ds(col0, wo), :].reshape(ho * wo, cin)

    acc = None
    for t, (row0, col0) in enumerate(taps):
        part = jnp.dot(window(row0, col0), w_ref[t],
                       preferred_element_type=jnp.float32)          # MXU, f32 acc
        acc = part if acc is None else acc + part

    sb = sb_ref[...]
    y = acc * sb[0:1, :] + sb[1:2, :]                 # BN (alpha folded into scale)
    y = jnp.where(y > 0.0, y, a_ref[0] * y)           # PReLU (shared scalar)
    if with_residual:
        y = y + r_ref[0].astype(jnp.float32)          # fused `out += identity`
    o_ref[0] = y.astype(o_ref.dtype)

    if sc_tap is not None:                            # fused 1x1 shortcut conv
        ysc = jnp.dot(window(sc_tap[0], sc_tap[1]), ws_ref[...],
                      preferred_element_type=jnp.float32)
        sbs = sbs_ref[...]
        ysc = ysc * sbs[0:1, :] + sbs[1:2, :]
        ysc = jnp.where(ysc > 0.0, ysc, as_ref[0] * ysc)
        id_ref[0] = ysc.astype(id_ref.dtype)


# ------------------------------ conv wrapper ------------------------------- #
def _fold_bn(params, cout_pad):
    """Fold alpha into the BN scale; returns (2, Cpad) f32 [scale ; bias] (pad = 0)."""
    inv_std = params["bn_gamma"] / jnp.sqrt(params["bn_var"] + _BN_EPS)
    scale = params["alpha"][0] * inv_std
    bias = params["bn_beta"] - params["bn_mean"] * inv_std
    sb = jnp.stack([scale, bias], axis=0).astype(jnp.float32)
    return jnp.pad(sb, ((0, 0), (0, cout_pad - sb.shape[1])))


def binary_conv2d(x_nhwc, params, *, stride, padding, residual=None,
                  shortcut_params=None):
    """One BinaryConv2d (binarize -> conv -> BN -> PReLU) as a single pallas_call.

    Takes NHWC input (any float dtype; quantized to bf16), returns the output as
    a lane-dense (N, Ho*Wo, Cpad) bf16 tensor (padded channels are zero).
    Optionally fuses `out += residual` (residual must already be
    (N, Ho*Wo, Cpad) bf16) and/or the block's 1x1/stride-s shortcut BinaryConv2d
    (returned as a second (N, Ho*Wo, Cpad) bf16 output).
    """
    w = params["weight"]                               # (KH, KW, Cin_w, Cout) HWIO
    N, H, W, Cx = x_nhwc.shape
    KH, KW, Cin_w, Cout = w.shape
    assert Cx >= Cin_w
    s, p = stride, padding
    Hp, Wp = H + 2 * p, W + 2 * p
    Ho = (Hp - KH) // s + 1
    Wo = (Wp - KW) // s + 1
    Hq, Wq = -(-Hp // s), -(-Wp // s)                  # per-phase spatial extents
    P = s * s
    Cpad = _round_up(Cout, 128)                        # lane-dense output / MXU N dim
    HoWo = Ho * Wo

    # ---- single host pass: zero-pad + phase-decompose (space-to-batch), bf16 ----
    xe = jnp.pad(x_nhwc.astype(jnp.bfloat16),
                 ((0, 0), (p, p + Hq * s - Hp), (p, p + Wq * s - Wp), (0, 0)))
    xs = xe.reshape(N, Hq, s, Wq, s, Cx).transpose(0, 2, 4, 1, 3, 5)
    xs = xs.reshape(N, P * Hq, Wq, Cx)                 # phase (rh,rw) at rows [ph*Hq:]

    # Static tap table: (row, col) offsets into the phase-stacked image.
    taps = tuple(((((kh % s) * s + (kw % s)) * Hq + kh // s, kw // s)
                  for kh in range(KH) for kw in range(KW)))

    # sign(w) once; +/-1 exact in bf16; alpha lives in the BN scale.  Padded
    # input-channel rows (conv2 consumes the Cpad-wide intermediate) are zero.
    bw = jnp.sign(w).reshape(KH * KW, Cin_w, Cout)
    bw = jnp.pad(bw, ((0, 0), (0, Cx - Cin_w), (0, Cpad - Cout))).astype(jnp.bfloat16)
    sb = _fold_bn(params, Cpad)
    prelu = params["prelu"].reshape(1).astype(jnp.float32)

    inputs = [xs, bw, sb, prelu]
    in_specs = [
        pl.BlockSpec((1, P * Hq, Wq, Cx), lambda n: (n, 0, 0, 0)),   # streamed per n
        pl.BlockSpec((KH * KW, Cx, Cpad), lambda n: (0, 0, 0)),      # resident weight
        pl.BlockSpec((2, Cpad), lambda n: (0, 0)),                   # resident BN
        pl.BlockSpec(memory_space=pltpu.MemorySpace.SMEM),           # PReLU scalar
    ]

    sc_tap = None
    if shortcut_params is not None:
        ws = shortcut_params["weight"]
        assert ws.shape[:2] == (1, 1) and ws.shape[2] == Cin_w and ws.shape[3] == Cout
        assert KH == KW and 2 * p == KH - 1            # output grids line up
        ph = (p % s) * s + (p % s)
        sc_tap = (ph * Hq + p // s, p // s)            # centre tap of the same image
        bws = jnp.sign(ws).reshape(Cin_w, Cout)
        bws = jnp.pad(bws, ((0, Cx - Cin_w), (0, Cpad - Cout))).astype(jnp.bfloat16)
        inputs += [bws, _fold_bn(shortcut_params, Cpad),
                   shortcut_params["prelu"].reshape(1).astype(jnp.float32)]
        in_specs += [
            pl.BlockSpec((Cx, Cpad), lambda n: (0, 0)),
            pl.BlockSpec((2, Cpad), lambda n: (0, 0)),
            pl.BlockSpec(memory_space=pltpu.MemorySpace.SMEM),
        ]

    if residual is not None:
        assert residual.shape == (N, HoWo, Cpad) and residual.dtype == jnp.bfloat16
        inputs.append(residual)
        in_specs.append(pl.BlockSpec((1, HoWo, Cpad), lambda n: (n, 0, 0)))

    n_outs = 2 if shortcut_params is not None else 1
    out_shape = tuple(jax.ShapeDtypeStruct((N, HoWo, Cpad), jnp.bfloat16)
                      for _ in range(n_outs))
    out_specs = tuple(pl.BlockSpec((1, HoWo, Cpad), lambda n: (n, 0, 0))
                      for _ in range(n_outs))
    if n_outs == 1:
        out_shape, out_specs = out_shape[0], out_specs[0]

    # Exact per-buffer VMEM accounting (double-buffered streams, resident x2 to
    # be safe) + f32 accumulator temporaries, with headroom in _pick_vmem_limit.
    work = (2 * P * Hq * Wq * Cx * 2                       # input image block
            + 2 * KH * KW * Cx * Cpad * 2                  # weights
            + 2 * 2 * Cpad * 4                             # BN scale/bias
            + 2 * n_outs * HoWo * Cpad * 2                 # bf16 outputs
            + (2 * HoWo * Cpad * 2 if residual is not None else 0)
            + (2 * (Cx * Cpad * 2 + 2 * Cpad * 4) if shortcut_params is not None else 0)
            + (1 + n_outs) * HoWo * Cpad * 4               # f32 accumulators
            + HoWo * Cx * 4)                               # tap-window temporaries
    vmem_limit = _pick_vmem_limit(work)

    kernel = functools.partial(_binconv_tap_kernel, taps, Ho, Wo, sc_tap,
                               residual is not None)
    return pl.pallas_call(
        kernel,
        out_shape=out_shape,
        grid=(N,),
        in_specs=in_specs,
        out_specs=out_specs,
        compiler_params=pltpu.CompilerParams(
            dimension_semantics=("parallel",),     # batch elements independent
            vmem_limit_bytes=vmem_limit),
    )(*inputs)


# ----------------------------- residual block ------------------------------ #
def binary_residual_block(x_nchw, params, *, stride):
    """BinaryResidualBlock.forward.  Input/output NCHW (PyTorch convention)."""
    x = jnp.transpose(x_nchw, (0, 2, 3, 1)).astype(jnp.float32)   # NCHW -> NHWC
    N, H, W, Cin = x.shape
    Cout = params["conv1"]["weight"].shape[-1]
    Cpad = _round_up(Cout, 128)
    Ho = (H + 2 - 3) // stride + 1
    Wo = (W + 2 - 3) // stride + 1

    if "shortcut" in params:
        out1, identity = binary_conv2d(
            x, params["conv1"], stride=stride, padding=1,
            shortcut_params=params["shortcut"])       # shortcut fused into conv1
    else:
        out1 = binary_conv2d(x, params["conv1"], stride=stride, padding=1)
        identity = jnp.pad(x.astype(jnp.bfloat16),    # stride==1, Cin==Cout here
                           ((0, 0), (0, 0), (0, 0), (0, Cpad - Cin))
                           ).reshape(N, H * W, Cpad)

    # out1 stays in its (N, Ho*Wo, Cpad) bf16 kernel layout; only a free reshape
    # (and conv2's small spatial pad) sits between the two pallas_calls.
    out2 = binary_conv2d(out1.reshape(N, Ho, Wo, Cpad), params["conv2"],
                         stride=1, padding=1, residual=identity)  # fused `+= identity`
    out = out2.reshape(N, Ho, Wo, Cpad)[..., :Cout]
    return jnp.transpose(out, (0, 3, 1, 2)).astype(jnp.float32)   # NHWC -> NCHW


# ----------------------------- parameter init ------------------------------ #
def init_binary_conv_params(key, cin, cout, k):
    w = jax.random.normal(key, (k, k, cin, cout), jnp.float32) * 0.1
    return dict(
        weight=w,                                     # conv.weight (HWIO)
        alpha=jnp.array([0.5], jnp.float32),          # alpha = 0.5
        bn_gamma=jnp.ones((cout,), jnp.float32),      # BatchNorm2d defaults
        bn_beta=jnp.zeros((cout,), jnp.float32),
        bn_mean=jnp.zeros((cout,), jnp.float32),
        bn_var=jnp.ones((cout,), jnp.float32),
        prelu=jnp.array([0.25], jnp.float32),         # nn.PReLU() default
    )


def init_block_params(key, cin, cout, stride):
    k1, k2, k3 = jax.random.split(key, 3)
    params = dict(
        conv1=init_binary_conv_params(k1, cin, cout, 3),
        conv2=init_binary_conv_params(k2, cout, cout, 3),
    )
    if stride != 1 or cin != cout:
        params["shortcut"] = init_binary_conv_params(k3, cin, cout, 1)
    return params


# --------------------------- pure-JAX references --------------------------- #
def _ref_binary_conv(x_nhwc, p, stride, padding):
    bw = jnp.sign(p["weight"]) * p["alpha"][0]
    y = lax.conv_general_dilated(
        x_nhwc, bw, (stride, stride), [(padding, padding)] * 2,
        dimension_numbers=("NHWC", "HWIO", "NHWC"))
    s = p["bn_gamma"] / jnp.sqrt(p["bn_var"] + _BN_EPS)
    y = y * s + (p["bn_beta"] - p["bn_mean"] * s)
    return jnp.where(y > 0, y, p["prelu"][0] * y)


def _ref_block(x_nchw, params, stride, quant=False):
    # quant=True mirrors the kernel pipeline's bf16 activation quantization
    # points (input, conv1 output, identity, final store); math stays f32.
    q = (lambda a: a.astype(jnp.bfloat16).astype(jnp.float32)) if quant else (lambda a: a)
    x = q(jnp.transpose(x_nchw, (0, 2, 3, 1)))
    if "shortcut" in params:
        idn = q(_ref_binary_conv(x, params["shortcut"], stride, 0))
    else:
        idn = x
    out = q(_ref_binary_conv(x, params["conv1"], stride, 1))
    out = _ref_binary_conv(out, params["conv2"], 1, 1) + idn
    return jnp.transpose(q(out), (0, 3, 1, 2))


# ----------------------------------- main ----------------------------------- #
def _run_and_check(key, N, Cin, H, W, Cout, stride):
    k_x, k_p = jax.random.split(key)
    x = jax.random.normal(k_x, (N, Cin, H, W), jnp.float32)
    params = init_block_params(k_p, Cin, Cout, stride)

    out = jax.block_until_ready(binary_residual_block(x, params, stride=stride))
    ho = (H - 1) // stride + 1
    wo = (W - 1) // stride + 1
    assert out.shape == (N, Cout, ho, wo), out.shape

    # Tight check vs. a reference with the same bf16 activation quantization
    # (validates phase decomposition / tap table / BN fold / fused shortcut+residual).
    ref_q = _ref_block(x, params, stride, quant=True)
    assert jnp.allclose(out, ref_q, atol=5e-2, rtol=5e-2), \
        float(jnp.max(jnp.abs(out - ref_q)))
    # Loose check vs. exact f32 semantics (deviation bounded by bf16 activation
    # rounding; matmul accumulation is kept in float32).
    ref_f = _ref_block(x, params, stride, quant=False)
    assert jnp.allclose(out, ref_f, atol=2.5e-1, rtol=1e-1), \
        float(jnp.max(jnp.abs(out - ref_f)))


if __name__ == "__main__":
    key = jax.random.PRNGKey(0)
    k1, k2 = jax.random.split(key)
    # Downsampling block: exercises the fused 1x1-shortcut path + residual fusion.
    _run_and_check(k1, N=2, Cin=4, H=16, W=16, Cout=8, stride=2)
    # Identity-shortcut block (stride=1, cin==cout): residual is the raw input.
    _run_and_check(k2, N=2, Cin=8, H=8, W=8, Cout=8, stride=1)
    print("KERNEL_OK")
</pallas_src>

<mosaic_0001>
module attributes {stable_mosaic.version = 11 : i64} {
  func.func @_binconv_tap_kernel(%arg0: i32, %arg1: memref<1x36x9x4xbf16, #tpu.memory_space<vmem>>, %arg2: memref<9x4x128xbf16, #tpu.memory_space<vmem>>, %arg3: memref<2x128xf32, #tpu.memory_space<vmem>>, %arg4: memref<1xf32, #tpu.memory_space<smem>>, %arg5: memref<4x128xbf16, #tpu.memory_space<vmem>>, %arg6: memref<2x128xf32, #tpu.memory_space<vmem>>, %arg7: memref<1xf32, #tpu.memory_space<smem>>, %arg8: memref<1x64x128xbf16, #tpu.memory_space<vmem>>, %arg9: memref<1x64x128xbf16, #tpu.memory_space<vmem>>) attributes {dimension_semantics = [#tpu.dimension_semantics<parallel>], iteration_bounds = array<i64: 2>, scalar_prefetch = 0 : i64, scratch_operands = 0 : i64, tpu.core_type = #tpu.core_type<tc>, window_params = [{transform_indices = @transform_0, window_bounds = array<i64: 1, 36, 9, 4>}, {pipeline_mode = #tpu.pipeline_mode<synchronous>, transform_indices = @transform_1, window_bounds = array<i64: 9, 4, 128>}, {pipeline_mode = #tpu.pipeline_mode<synchronous>, transform_indices = @transform_2, window_bounds = array<i64: 2, 128>}, {transform_indices = @transform_3, window_bounds = array<i64: 1>}, {pipeline_mode = #tpu.pipeline_mode<synchronous>, transform_indices = @transform_4, window_bounds = array<i64: 4, 128>}, {pipeline_mode = #tpu.pipeline_mode<synchronous>, transform_indices = @transform_5, window_bounds = array<i64: 2, 128>}, {transform_indices = @transform_6, window_bounds = array<i64: 1>}, {transform_indices = @transform_7, window_bounds = array<i64: 1, 64, 128>}, {transform_indices = @transform_8, window_bounds = array<i64: 1, 64, 128>}]} {
    %c0 = arith.constant 0 : index
    %c0_0 = arith.constant 0 : index
    %c0_1 = arith.constant 0 : index
    %c0_2 = arith.constant 0 : index
    %0 = vector.load %arg1[%c0, %c0_0, %c0_1, %c0_2] : memref<1x36x9x4xbf16, #tpu.memory_space<vmem>>, vector<1x8x8x4xbf16>
    %1 = vector.shape_cast %0 : vector<1x8x8x4xbf16> to vector<8x8x4xbf16>
    %2 = vector.shape_cast %1 : vector<8x8x4xbf16> to vector<64x4xbf16>
    %c0_3 = arith.constant 0 : index
    %c0_4 = arith.constant 0 : index
    %c0_5 = arith.constant 0 : index
    %3 = vector.load %arg2[%c0_3, %c0_4, %c0_5] : memref<9x4x128xbf16, #tpu.memory_space<vmem>>, vector<1x4x128xbf16>
    %4 = vector.shape_cast %3 : vector<1x4x128xbf16> to vector<4x128xbf16>
    %cst = arith.constant dense<0.000000e+00> : vector<64x128xf32>
    %5 = tpu.matmul %2, %4, %cst {dimension_numbers = #tpu.dot_dimension_numbers<[1], [0], [0], [1], [0, 0, 1, 1], [], []>} : vector<64x4xbf16>, vector<4x128xbf16>, vector<64x128xf32> -> vector<64x128xf32>
    %c0_6 = arith.constant 0 : index
    %c9 = arith.constant 9 : index
    %c0_7 = arith.constant 0 : index
    %c0_8 = arith.constant 0 : index
    %6 = vector.load %arg1[%c0_6, %c9, %c0_7, %c0_8] : memref<1x36x9x4xbf16, #tpu.memory_space<vmem>>, vector<1x8x8x4xbf16>
    %7 = vector.shape_cast %6 : vector<1x8x8x4xbf16> to vector<8x8x4xbf16>
    %8 = vector.shape_cast %7 : vector<8x8x4xbf16> to vector<64x4xbf16>
    %c1 = arith.constant 1 : index
    %c0_9 = arith.constant 0 : index
    %c0_10 = arith.constant 0 : index
    %9 = vector.load %arg2[%c1, %c0_9, %c0_10] : memref<9x4x128xbf16, #tpu.memory_space<vmem>>, vector<1x4x128xbf16>
    %10 = vector.shape_cast %9 : vector<1x4x128xbf16> to vector<4x128xbf16>
    %cst_11 = arith.constant dense<0.000000e+00> : vector<64x128xf32>
    %11 = tpu.matmul %8, %10, %cst_11 {dimension_numbers = #tpu.dot_dimension_numbers<[1], [0], [0], [1], [0, 0, 1, 1], [], []>} : vector<64x4xbf16>, vector<4x128xbf16>, vector<64x128xf32> -> vector<64x128xf32>
    %12 = arith.addf %5, %11 : vector<64x128xf32>
    %c0_12 = arith.constant 0 : index
    %c0_13 = arith.constant 0 : index
    %c1_14 = arith.constant 1 : index
    %c0_15 = arith.constant 0 : index
    %13 = vector.load %arg1[%c0_12, %c0_13, %c1_14, %c0_15] : memref<1x36x9x4xbf16, #tpu.memory_space<vmem>>, vector<1x8x8x4xbf16>
    %14 = vector.shape_cast %13 : vector<1x8x8x4xbf16> to vector<8x8x4xbf16>
    %15 = vector.shape_cast %14 : vector<8x8x4xbf16> to vector<64x4xbf16>
    %c2 = arith.constant 2 : index
    %c0_16 = arith.constant 0 : index
    %c0_17 = arith.constant 0 : index
    %16 = vector.load %arg2[%c2, %c0_16, %c0_17] : memref<9x4x128xbf16, #tpu.memory_space<vmem>>, vector<1x4x128xbf16>
    %17 = vector.shape_cast %16 : vector<1x4x128xbf16> to vector<4x128xbf16>
    %cst_18 = arith.constant dense<0.000000e+00> : vector<64x128xf32>
    %18 = tpu.matmul %15, %17, %cst_18 {dimension_numbers = #tpu.dot_dimension_numbers<[1], [0], [0], [1], [0, 0, 1, 1], [], []>} : vector<64x4xbf16>, vector<4x128xbf16>, vector<64x128xf32> -> vector<64x128xf32>
    %19 = arith.addf %12, %18 : vector<64x128xf32>
    %c0_19 = arith.constant 0 : index
    %c18 = arith.constant 18 : index
    %c0_20 = arith.constant 0 : index
    %c0_21 = arith.constant 0 : index
    %20 = vector.load %arg1[%c0_19, %c18, %c0_20, %c0_21] : memref<1x36x9x4xbf16, #tpu.memory_space<vmem>>, vector<1x8x8x4xbf16>
    %21 = vector.shape_cast %20 : vector<1x8x8x4xbf16> to vector<8x8x4xbf16>
    %22 = vector.shape_cast %21 : vector<8x8x4xbf16> to vector<64x4xbf16>
    %c3 = arith.constant 3 : index
    %c0_22 = arith.constant 0 : index
    %c0_23 = arith.constant 0 : index
    %23 = vector.load %arg2[%c3, %c0_22, %c0_23] : memref<9x4x128xbf16, #tpu.memory_space<vmem>>, vector<1x4x128xbf16>
    %24 = vector.shape_cast %23 : vector<1x4x128xbf16> to vector<4x128xbf16>
    %cst_24 = arith.constant dense<0.000000e+00> : vector<64x128xf32>
    %25 = tpu.matmul %22, %24, %cst_24 {dimension_numbers = #tpu.dot_dimension_numbers<[1], [0], [0], [1], [0, 0, 1, 1], [], []>} : vector<64x4xbf16>, vector<4x128xbf16>, vector<64x128xf32> -> vector<64x128xf32>
    %26 = arith.addf %19, %25 : vector<64x128xf32>
    %c0_25 = arith.constant 0 : index
    %c27 = arith.constant 27 : index
    %c0_26 = arith.constant 0 : index
    %c0_27 = arith.constant 0 : index
    %27 = vector.load %arg1[%c0_25, %c27, %c0_26, %c0_27] : memref<1x36x9x4xbf16, #tpu.memory_space<vmem>>, vector<1x8x8x4xbf16>
    %28 = vector.shape_cast %27 : vector<1x8x8x4xbf16> to vector<8x8x4xbf16>
    %29 = vector.shape_cast %28 : vector<8x8x4xbf16> to vector<64x4xbf16>
    %c4 = arith.constant 4 : index
    %c0_28 = arith.constant 0 : index
    %c0_29 = arith.constant 0 : index
    %30 = vector.load %arg2[%c4, %c0_28, %c0_29] : memref<9x4x128xbf16, #tpu.memory_space<vmem>>, vector<1x4x128xbf16>
    %31 = vector.shape_cast %30 : vector<1x4x128xbf16> to vector<4x128xbf16>
    %cst_30 = arith.constant dense<0.000000e+00> : vector<64x128xf32>
    %32 = tpu.matmul %29, %31, %cst_30 {dimension_numbers = #tpu.dot_dimension_numbers<[1], [0], [0], [1], [0, 0, 1, 1], [], []>} : vector<64x4xbf16>, vector<4x128xbf16>, vector<64x128xf32> -> vector<64x128xf32>
    %33 = arith.addf %26, %32 : vector<64x128xf32>
    %c0_31 = arith.constant 0 : index
    %c18_32 = arith.constant 18 : index
    %c1_33 = arith.constant 1 : index
    %c0_34 = arith.constant 0 : index
    %34 = vector.load %arg1[%c0_31, %c18_32, %c1_33, %c0_34] : memref<1x36x9x4xbf16, #tpu.memory_space<vmem>>, vector<1x8x8x4xbf16>
    %35 = vector.shape_cast %34 : vector<1x8x8x4xbf16> to vector<8x8x4xbf16>
    %36 = vector.shape_cast %35 : vector<8x8x4xbf16> to vector<64x4xbf16>
    %c5 = arith.constant 5 : index
    %c0_35 = arith.constant 0 : index
    %c0_36 = arith.constant 0 : index
    %37 = vector.load %arg2[%c5, %c0_35, %c0_36] : memref<9x4x128xbf16, #tpu.memory_space<vmem>>, vector<1x4x128xbf16>
    %38 = vector.shape_cast %37 : vector<1x4x128xbf16> to vector<4x128xbf16>
    %cst_37 = arith.constant dense<0.000000e+00> : vector<64x128xf32>
    %39 = tpu.matmul %36, %38, %cst_37 {dimension_numbers = #tpu.dot_dimension_numbers<[1], [0], [0], [1], [0, 0, 1, 1], [], []>} : vector<64x4xbf16>, vector<4x128xbf16>, vector<64x128xf32> -> vector<64x128xf32>
    %40 = arith.addf %33, %39 : vector<64x128xf32>
    %c0_38 = arith.constant 0 : index
    %c1_39 = arith.constant 1 : index
    %c0_40 = arith.constant 0 : index
    %c0_41 = arith.constant 0 : index
    %41 = vector.load %arg1[%c0_38, %c1_39, %c0_40, %c0_41] : memref<1x36x9x4xbf16, #tpu.memory_space<vmem>>, vector<1x8x8x4xbf16>
    %42 = vector.shape_cast %41 : vector<1x8x8x4xbf16> to vector<8x8x4xbf16>
    %43 = vector.shape_cast %42 : vector<8x8x4xbf16> to vector<64x4xbf16>
    %c6 = arith.constant 6 : index
    %c0_42 = arith.constant 0 : index
    %c0_43 = arith.constant 0 : index
    %44 = vector.load %arg2[%c6, %c0_42, %c0_43] : memref<9x4x128xbf16, #tpu.memory_space<vmem>>, vector<1x4x128xbf16>
    %45 = vector.shape_cast %44 : vector<1x4x128xbf16> to vector<4x128xbf16>
    %cst_44 = arith.constant dense<0.000000e+00> : vector<64x128xf32>
    %46 = tpu.matmul %43, %45, %cst_44 {dimension_numbers = #tpu.dot_dimension_numbers<[1], [0], [0], [1], [0, 0, 1, 1], [], []>} : vector<64x4xbf16>, vector<4x128xbf16>, vector<64x128xf32> -> vector<64x128xf32>
    %47 = arith.addf %40, %46 : vector<64x128xf32>
    %c0_45 = arith.constant 0 : index
    %c10 = arith.constant 10 : index
    %c0_46 = arith.constant 0 : index
    %c0_47 = arith.constant 0 : index
    %48 = vector.load %arg1[%c0_45, %c10, %c0_46, %c0_47] : memref<1x36x9x4xbf16, #tpu.memory_space<vmem>>, vector<1x8x8x4xbf16>
    %49 = vector.shape_cast %48 : vector<1x8x8x4xbf16> to vector<8x8x4xbf16>
    %50 = vector.shape_cast %49 : vector<8x8x4xbf16> to vector<64x4xbf16>
    %c7 = arith.constant 7 : index
    %c0_48 = arith.constant 0 : index
    %c0_49 = arith.constant 0 : index
    %51 = vector.load %arg2[%c7, %c0_48, %c0_49] : memref<9x4x128xbf16, #tpu.memory_space<vmem>>, vector<1x4x128xbf16>
    %52 = vector.shape_cast %51 : vector<1x4x128xbf16> to vector<4x128xbf16>
    %cst_50 = arith.constant dense<0.000000e+00> : vector<64x128xf32>
    %53 = tpu.matmul %50, %52, %cst_50 {dimension_numbers = #tpu.dot_dimension_numbers<[1], [0], [0], [1], [0, 0, 1, 1], [], []>} : vector<64x4xbf16>, vector<4x128xbf16>, vector<64x128xf32> -> vector<64x128xf32>
    %54 = arith.addf %47, %53 : vector<64x128xf32>
    %c0_51 = arith.constant 0 : index
    %c1_52 = arith.constant 1 : index
    %c1_53 = arith.constant 1 : index
    %c0_54 = arith.constant 0 : index
    %55 = vector.load %arg1[%c0_51, %c1_52, %c1_53, %c0_54] : memref<1x36x9x4xbf16, #tpu.memory_space<vmem>>, vector<1x8x8x4xbf16>
    %56 = vector.shape_cast %55 : vector<1x8x8x4xbf16> to vector<8x8x4xbf16>
    %57 = vector.shape_cast %56 : vector<8x8x4xbf16> to vector<64x4xbf16>
    %c8 = arith.constant 8 : index
    %c0_55 = arith.constant 0 : index
    %c0_56 = arith.constant 0 : index
    %58 = vector.load %arg2[%c8, %c0_55, %c0_56] : memref<9x4x128xbf16, #tpu.memory_space<vmem>>, vector<1x4x128xbf16>
    %59 = vector.shape_cast %58 : vector<1x4x128xbf16> to vector<4x128xbf16>
    %cst_57 = arith.constant dense<0.000000e+00> : vector<64x128xf32>
    %60 = tpu.matmul %57, %59, %cst_57 {dimension_numbers = #tpu.dot_dimension_numbers<[1], [0], [0], [1], [0, 0, 1, 1], [], []>} : vector<64x4xbf16>, vector<4x128xbf16>, vector<64x128xf32> -> vector<64x128xf32>
    %61 = arith.addf %54, %60 : vector<64x128xf32>
    %c0_58 = arith.constant 0 : index
    %c0_59 = arith.constant 0 : index
    %62 = vector.load %arg3[%c0_58, %c0_59] : memref<2x128xf32, #tpu.memory_space<vmem>>, vector<2x128xf32>
    %63 = vector.extract_strided_slice %62 {offsets = [0, 0], sizes = [1, 128], strides = [1, 1]} : vector<2x128xf32> to vector<1x128xf32>
    %64 = vector.broadcast %63 : vector<1x128xf32> to vector<64x128xf32>
    %65 = arith.mulf %61, %64 : vector<64x128xf32>
    %66 = vector.extract_strided_slice %62 {offsets = [1, 0], sizes = [1, 128], strides = [1, 1]} : vector<2x128xf32> to vector<1x128xf32>
    %67 = vector.broadcast %66 : vector<1x128xf32> to vector<64x128xf32>
    %68 = arith.addf %65, %67 : vector<64x128xf32>
    %cst_60 = arith.constant 0.000000e+00 : f32
    %69 = vector.broadcast %cst_60 : f32 to vector<64x128xf32>
    %70 = arith.cmpf ogt, %68, %69 : vector<64x128xf32>
    %c0_61 = arith.constant 0 : index
    %71 = memref.load %arg4[%c0_61] : memref<1xf32, #tpu.memory_space<smem>>
    %72 = vector.broadcast %71 : f32 to vector<64x128xf32>
    %73 = arith.mulf %72, %68 : vector<64x128xf32>
    %74 = arith.select %70, %68, %73 : vector<64x128xi1>, vector<64x128xf32>
    %75 = arith.truncf %74 : vector<64x128xf32> to vector<64x128xbf16>
    %c0_62 = arith.constant 0 : index
    %c0_63 = arith.constant 0 : index
    %c0_64 = arith.constant 0 : index
    %76 = vector.load %arg8[%c0_62, %c0_63, %c0_64] : memref<1x64x128xbf16, #tpu.memory_space<vmem>>, vector<1x64x128xbf16>
    %77 = vector.shape_cast %76 : vector<1x64x128xbf16> to vector<64x128xbf16>
    %78 = vector.shape_cast %75 : vector<64x128xbf16> to vector<1x64x128xbf16>
    tpu.vector_store %arg8[%c0_62, %c0_63, %c0_64], %78 {strides = array<i32>} : memref<1x64x128xbf16, #tpu.memory_space<vmem>>, vector<1x64x128xbf16>,
    %c0_65 = arith.constant 0 : index
    %c27_66 = arith.constant 27 : index
    %c0_67 = arith.constant 0 : index
    %c0_68 = arith.constant 0 : index
    %79 = vector.load %arg1[%c0_65, %c27_66, %c0_67, %c0_68] : memref<1x36x9x4xbf16, #tpu.memory_space<vmem>>, vector<1x8x8x4xbf16>
    %80 = vector.shape_cast %79 : vector<1x8x8x4xbf16> to vector<8x8x4xbf16>
    %81 = vector.shape_cast %80 : vector<8x8x4xbf16> to vector<64x4xbf16>
    %c0_69 = arith.constant 0 : index
    %c0_70 = arith.constant 0 : index
    %82 = vector.load %arg5[%c0_69, %c0_70] : memref<4x128xbf16, #tpu.memory_space<vmem>>, vector<4x128xbf16>
    %cst_71 = arith.constant dense<0.000000e+00> : vector<64x128xf32>
    %83 = tpu.matmul %81, %82, %cst_71 {dimension_numbers = #tpu.dot_dimension_numbers<[1], [0], [0], [1], [0, 0, 1, 1], [], []>} : vector<64x4xbf16>, vector<4x128xbf16>, vector<64x128xf32> -> vector<64x128xf32>
    %c0_72 = arith.constant 0 : index
    %c0_73 = arith.constant 0 : index
    %84 = vector.load %arg6[%c0_72, %c0_73] : memref<2x128xf32, #tpu.memory_space<vmem>>, vector<2x128xf32>
    %85 = vector.extract_strided_slice %84 {offsets = [0, 0], sizes = [1, 128], strides = [1, 1]} : vector<2x128xf32> to vector<1x128xf32>
    %86 = vector.broadcast %85 : vector<1x128xf32> to vector<64x128xf32>
    %87 = arith.mulf %83, %86 : vector<64x128xf32>
    %88 = vector.extract_strided_slice %84 {offsets = [1, 0], sizes = [1, 128], strides = [1, 1]} : vector<2x128xf32> to vector<1x128xf32>
    %89 = vector.broadcast %88 : vector<1x128xf32> to vector<64x128xf32>
    %90 = arith.addf %87, %89 : vector<64x128xf32>
    %cst_74 = arith.constant 0.000000e+00 : f32
    %91 = vector.broadcast %cst_74 : f32 to vector<64x128xf32>
    %92 = arith.cmpf ogt, %90, %91 : vector<64x128xf32>
    %c0_75 = arith.constant 0 : index
    %93 = memref.load %arg7[%c0_75] : memref<1xf32, #tpu.memory_space<smem>>
    %94 = vector.broadcast %93 : f32 to vector<64x128xf32>
    %95 = arith.mulf %94, %90 : vector<64x128xf32>
    %96 = arith.select %92, %90, %95 : vector<64x128xi1>, vector<64x128xf32>
    %97 = arith.truncf %96 : vector<64x128xf32> to vector<64x128xbf16>
    %c0_76 = arith.constant 0 : index
    %c0_77 = arith.constant 0 : index
    %c0_78 = arith.constant 0 : index
    %98 = vector.load %arg9[%c0_76, %c0_77, %c0_78] : memref<1x64x128xbf16, #tpu.memory_space<vmem>>, vector<1x64x128xbf16>
    %99 = vector.shape_cast %98 : vector<1x64x128xbf16> to vector<64x128xbf16>
    %100 = vector.shape_cast %97 : vector<64x128xbf16> to vector<1x64x128xbf16>
    tpu.vector_store %arg9[%c0_76, %c0_77, %c0_78], %100 {strides = array<i32>} : memref<1x64x128xbf16, #tpu.memory_space<vmem>>, vector<1x64x128xbf16>,
    return
  }
  func.func @transform_0(%arg0: i32) -> (i32, i32, i32, i32) {
    %c0_i32 = arith.constant 0 : i32
    %c0_i32_0 = arith.constant 0 : i32
    %c0_i32_1 = arith.constant 0 : i32
    %c0_i32_2 = arith.constant 0 : i32
    return %arg0, %c0_i32, %c0_i32_0, %c0_i32_1 : i32, i32, i32, i32
  }
  func.func @transform_1(%arg0: i32) -> (i32, i32, i32) {
    %c0_i32 = arith.constant 0 : i32
    %c0_i32_0 = arith.constant 0 : i32
    %c0_i32_1 = arith.constant 0 : i32
    %c0_i32_2 = arith.constant 0 : i32
    return %c0_i32, %c0_i32_0, %c0_i32_1 : i32, i32, i32
  }
  func.func @transform_2(%arg0: i32) -> (i32, i32) {
    %c0_i32 = arith.constant 0 : i32
    %c0_i32_0 = arith.constant 0 : i32
    %c0_i32_1 = arith.constant 0 : i32
    return %c0_i32, %c0_i32_0 : i32, i32
  }
  func.func @transform_3(%arg0: i32) -> i32 {
    %c0_i32 = arith.constant 0 : i32
    %c0_i32_0 = arith.constant 0 : i32
    return %c0_i32 : i32
  }
  func.func @transform_4(%arg0: i32) -> (i32, i32) {
    %c0_i32 = arith.constant 0 : i32
    %c0_i32_0 = arith.constant 0 : i32
    %c0_i32_1 = arith.constant 0 : i32
    return %c0_i32, %c0_i32_0 : i32, i32
  }
  func.func @transform_5(%arg0: i32) -> (i32, i32) {
    %c0_i32 = arith.constant 0 : i32
    %c0_i32_0 = arith.constant 0 : i32
    %c0_i32_1 = arith.constant 0 : i32
    return %c0_i32, %c0_i32_0 : i32, i32
  }
  func.func @transform_6(%arg0: i32) -> i32 {
    %c0_i32 = arith.constant 0 : i32
    %c0_i32_0 = arith.constant 0 : i32
    return %c0_i32 : i32
  }
  func.func @transform_7(%arg0: i32) -> (i32, i32, i32) {
    %c0_i32 = arith.constant 0 : i32
    %c0_i32_0 = arith.constant 0 : i32
    %c0_i32_1 = arith.constant 0 : i32
    return %arg0, %c0_i32, %c0_i32_0 : i32, i32, i32
  }
  func.func @transform_8(%arg0: i32) -> (i32, i32, i32) {
    %c0_i32 = arith.constant 0 : i32
    %c0_i32_0 = arith.constant 0 : i32
    %c0_i32_1 = arith.constant 0 : i32
    return %arg0, %c0_i32, %c0_i32_0 : i32, i32, i32
  }
}

</mosaic_0001>

<llo_original>
// kernel: tpu_custom_call.1
$region0: #{tpu_custom_call.1}
  #allocation0 [shape = 'u32[]', space=smem, size = 0x4, offset = 0x4, fixed_abs, tag = 'smem constant byte address 0x4 - core index']
  #allocation1 [shape = 'u32[72,128]{1,0:T(1,128)}', space=vmem, size = 0x9000, scoped, tag = 'internal scratch']
  #allocation2 [shape = 'f32[1]{0:T(128)S(6)}', space=smem, size = 0x200, scoped, tag = 'scoped memory for tpu_custom_call.1']
  #allocation3 [shape = 'f32[1]{0:T(128)S(6)}', space=smem, size = 0x200, scoped, tag = 'scoped memory for tpu_custom_call.1']
  %s0 = inlined_call_operand.vmem [shape: bf16[2,36,9,4], index: 0, kind: input, shape index: {}]
  %s1 = inlined_call_operand.vmem [shape: bf16[9,4,128], index: 1, kind: input, shape index: {}]
  %s2 = inlined_call_operand.vmem [shape: f32[2,128], index: 2, kind: input, shape index: {}]
  %s3 = inlined_call_operand.<no memory space> [shape: f32[1], index: 3, kind: input, shape index: {}]
  %s4 = inlined_call_operand.vmem [shape: bf16[4,128], index: 4, kind: input, shape index: {}]
  %s5 = inlined_call_operand.vmem [shape: f32[2,128], index: 5, kind: input, shape index: {}]
  %s6 = inlined_call_operand.<no memory space> [shape: f32[1], index: 6, kind: input, shape index: {}]
  %s7 = inlined_call_operand.hbm [shape: bf16[2,64,128], index: 7, kind: output, shape index: {0}]
  %s8 = inlined_call_operand.hbm [shape: bf16[2,64,128], index: 8, kind: output, shape index: {1}]
  %9 = xla_tuple %s7, %s8
  %s10 = sld [smem:[#allocation0]]
  $region69: #{tpu_custom_call.1} parent=0
    _
  %s12 = ssub.s32 1, %s10
  %s13 = scalar_select 0, %s12, %s10
  %14 = sst [smem:[#allocation2]] %s3
  %15 = sst [smem:[#allocation3]] %s6
  $region1: #{tpu_custom_call.1} parent=0
    #allocation4 [shape = 'u8[32768]{0}', space=vmem, size = 0x8000, scoped, tag = 'output window, operand 0']
    #allocation5 [shape = 's32[2]{0}', space=sflag, size = 0x8, scoped, tag = 'scoped memory for tpu_custom_call.1']
    #allocation6 [shape = 'u8[32768]{0}', space=vmem, size = 0x8000, scoped, tag = 'output window, operand 1']
    #allocation7 [shape = 's32[2]{0}', space=sflag, size = 0x8, scoped, tag = 'scoped memory for tpu_custom_call.1']
    %16 = vsyncpa [#allocation5], 0
    %s17 = scalar_lea.sflag [#allocation5], 1
    %18 = vsyncpa %s17, 0
    %19 = vsyncpa [#allocation7], 0
    %s20 = scalar_lea.sflag [#allocation7], 1
    %21 = vsyncpa %s20, 0
    loop: start=0, step=1, limit=4
    $region2: #{tpu_custom_call.1} parent=1 // loop_pre_header
      _
    $region3: #{tpu_custom_call.1} parent=1 // loop_header
      %s23 = sphi 0, %s27
      %p24 = scmp.ge.s32.totalorder %s23, 4
      %s33 = sphi 0, %s35
      %s36 = sphi 0, %s33
      %s37 = sphi 0, %s36
      %s53 = sphi 0, %s37
      %s57 = sphi 0, %s57
      %s59 = sphi 0, %s57
      %s60 = sphi 0, %s59
      %s74 = sphi 0, %s60
      %s78 = sphi 0, %s78
      %s80 = sphi 0, %s78
      %s81 = sphi 0, %s80
      %s95 = sphi 0, %s81
      %s99 = sphi 0, %s99
      %s101 = sphi 0, %s99
      %s102 = sphi 0, %s101
      %s116 = sphi 0, %s102
      %s120 = sphi 0, %s120
      %s122 = sphi 0, %s120
      %s123 = sphi 0, %s122
      %s137 = sphi 0, %s123
      %s141 = sphi 0, %s141
      %s143 = sphi 0, %s141
      %s144 = sphi 0, %s143
      %s158 = sphi 0, %s144
      %s162 = sphi 0, %s162
      %s164 = sphi 0, %s162
      %s165 = sphi 0, %s164
      %s179 = sphi 0, %s165
      %s185 = sphi 0, %s187
      %s188 = sphi 0, %s185
      %s189 = sphi 0, %s188
      %s205 = sphi 0, %s189
      %s211 = sphi 0, %s213
      %s214 = sphi 0, %s211
      %s215 = sphi 0, %s214
      %s231 = sphi 0, %s215
    $region4: #{tpu_custom_call.1} parent=1 // loop_header_branch
      %26 = sbr.rel (%p24) target = $region8
    $region5: #{tpu_custom_call.1} parent=1 // loop_body
      %s28 = ssub.s32 %s23, 1
      %s29 = ssub.s32 %s23, 2
      %s30 = sadd.s32 %s23, 1
      %s31 = ssub.s32 %s23, %s30
      %p32 = scmp.eq.s32.totalorder %s31, 0
      %s34 = sadd.s32 %s33, 1
      %s35 = scalar_select %p32, %s33, %s34
      %p38 = pneg %p32
      %p39 = scmp.eq.s32.totalorder %s23, 1
      %p40 = por %p38, %p39
      %p41 = scmp.ne.s32.totalorder %s33, %s36
      %p42 = scmp.eq.s32.totalorder %s23, 0
      %p43 = por %p41, %p42
      %p44 = scmp.ne.s32.totalorder %s33, %s36
      %p45 = scmp.eq.s32.totalorder %s28, 1
      %p46 = por %p44, %p45
      %p47 = scmp.ne.s32.totalorder %s36, %s37
      %p48 = scmp.eq.s32.totalorder %s28, 0
      %p49 = por %p47, %p48
      %p50 = scmp.ne.s32.totalorder %s36, %s37
      %p51 = scmp.eq.s32.totalorder %s29, 1
      %p52 = por %p50, %p51
      %p54 = scmp.ne.s32.totalorder %s37, %s53
      %p55 = scmp.eq.s32.totalorder %s29, 0
      %p56 = por %p54, %p55
      %s58 = sadd.s32 %s57, 1
      %p61 = scmp.eq.s32.totalorder %s23, 1
      %p62 = scmp.ne.s32.totalorder %s57, %s59
      %p63 = scmp.eq.s32.totalorder %s23, 0
      %p64 = por %p62, %p63
      %p65 = scmp.ne.s32.totalorder %s57, %s59
      %p66 = scmp.eq.s32.totalorder %s28, 1
      %p67 = por %p65, %p66
      %p68 = scmp.ne.s32.totalorder %s59, %s60
      %p69 = scmp.eq.s32.totalorder %s28, 0
      %p70 = por %p68, %p69
      %p71 = scmp.ne.s32.totalorder %s59, %s60
      %p72 = scmp.eq.s32.totalorder %s29, 1
      %p73 = por %p71, %p72
      %p75 = scmp.ne.s32.totalorder %s60, %s74
      %p76 = scmp.eq.s32.totalorder %s29, 0
      %p77 = por %p75, %p76
      %s79 = sadd.s32 %s78, 1
      %p82 = scmp.eq.s32.totalorder %s23, 1
      %p83 = scmp.ne.s32.totalorder %s78, %s80
      %p84 = scmp.eq.s32.totalorder %s23, 0
      %p85 = por %p83, %p84
      %p86 = scmp.ne.s32.totalorder %s78, %s80
      %p87 = scmp.eq.s32.totalorder %s28, 1
      %p88 = por %p86, %p87
      %p89 = scmp.ne.s32.totalorder %s80, %s81
      %p90 = scmp.eq.s32.totalorder %s28, 0
      %p91 = por %p89, %p90
      %p92 = scmp.ne.s32.totalorder %s80, %s81
      %p93 = scmp.eq.s32.totalorder %s29, 1
      %p94 = por %p92, %p93
      %p96 = scmp.ne.s32.totalorder %s81, %s95
      %p97 = scmp.eq.s32.totalorder %s29, 0
      %p98 = por %p96, %p97
      %s100 = sadd.s32 %s99, 1
      %p103 = scmp.eq.s32.totalorder %s23, 1
      %p104 = scmp.ne.s32.totalorder %s99, %s101
      %p105 = scmp.eq.s32.totalorder %s23, 0
      %p106 = por %p104, %p105
      %p107 = scmp.ne.s32.totalorder %s99, %s101
      %p108 = scmp.eq.s32.totalorder %s28, 1
      %p109 = por %p107, %p108
      %p110 = scmp.ne.s32.totalorder %s101, %s102
      %p111 = scmp.eq.s32.totalorder %s28, 0
      %p112 = por %p110, %p111
      %p113 = scmp.ne.s32.totalorder %s101, %s102
      %p114 = scmp.eq.s32.totalorder %s29, 1
      %p115 = por %p113, %p114
      %p117 = scmp.ne.s32.totalorder %s102, %s116
      %p118 = scmp.eq.s32.totalorder %s29, 0
      %p119 = por %p117, %p118
      %s121 = sadd.s32 %s120, 1
      %p124 = scmp.eq.s32.totalorder %s23, 1
      %p125 = scmp.ne.s32.totalorder %s120, %s122
      %p126 = scmp.eq.s32.totalorder %s23, 0
      %p127 = por %p125, %p126
      %p128 = scmp.ne.s32.totalorder %s120, %s122
      %p129 = scmp.eq.s32.totalorder %s28, 1
      %p130 = por %p128, %p129
      %p131 = scmp.ne.s32.totalorder %s122, %s123
      %p132 = scmp.eq.s32.totalorder %s28, 0
      %p133 = por %p131, %p132
      %p134 = scmp.ne.s32.totalorder %s122, %s123
      %p135 = scmp.eq.s32.totalorder %s29, 1
      %p136 = por %p134, %p135
      %p138 = scmp.ne.s32.totalorder %s123, %s137
      %p139 = scmp.eq.s32.totalorder %s29, 0
      %p140 = por %p138, %p139
      %s142 = sadd.s32 %s141, 1
      %p145 = scmp.eq.s32.totalorder %s23, 1
      %p146 = scmp.ne.s32.totalorder %s141, %s143
      %p147 = scmp.eq.s32.totalorder %s23, 0
      %p148 = por %p146, %p147
      %p149 = scmp.ne.s32.totalorder %s141, %s143
      %p150 = scmp.eq.s32.totalorder %s28, 1
      %p151 = por %p149, %p150
      %p152 = scmp.ne.s32.totalorder %s143, %s144
      %p153 = scmp.eq.s32.totalorder %s28, 0
      %p154 = por %p152, %p153
      %p155 = scmp.ne.s32.totalorder %s143, %s144
      %p156 = scmp.eq.s32.totalorder %s29, 1
      %p157 = por %p155, %p156
      %p159 = scmp.ne.s32.totalorder %s144, %s158
      %p160 = scmp.eq.s32.totalorder %s29, 0
      %p161 = por %p159, %p160
      %s163 = sadd.s32 %s162, 1
      %p166 = scmp.eq.s32.totalorder %s23, 1
      %p167 = scmp.ne.s32.totalorder %s162, %s164
      %p168 = scmp.eq.s32.totalorder %s23, 0
      %p169 = por %p167, %p168
      %p170 = scmp.ne.s32.totalorder %s162, %s164
      %p171 = scmp.eq.s32.totalorder %s28, 1
      %p172 = por %p170, %p171
      %p173 = scmp.ne.s32.totalorder %s164, %s165
      %p174 = scmp.eq.s32.totalorder %s28, 0
      %p175 = por %p173, %p174
      %p176 = scmp.ne.s32.totalorder %s164, %s165
      %p177 = scmp.eq.s32.totalorder %s29, 1
      %p178 = por %p176, %p177
      %p180 = scmp.ne.s32.totalorder %s165, %s179
      %p181 = scmp.eq.s32.totalorder %s29, 0
      %p182 = por %p180, %p181
      %s183 = ssub.s32 %s23, %s30
      %p184 = scmp.eq.s32.totalorder %s183, 0
      %s186 = sadd.s32 %s185, 1
      %s187 = scalar_select %p184, %s185, %s186
      %p190 = pneg %p184
      %p191 = scmp.eq.s32.totalorder %s23, 1
      %p192 = por %p190, %p191
      %p193 = scmp.ne.s32.totalorder %s185, %s188
      %p194 = scmp.eq.s32.totalorder %s23, 0
      %p195 = por %p193, %p194
      %p196 = scmp.ne.s32.totalorder %s185, %s188
      %p197 = scmp.eq.s32.totalorder %s28, 1
      %p198 = por %p196, %p197
      %p199 = scmp.ne.s32.totalorder %s188, %s189
      %p200 = scmp.eq.s32.totalorder %s28, 0
      %p201 = por %p199, %p200
      %p202 = scmp.ne.s32.totalorder %s188, %s189
      %p203 = scmp.eq.s32.totalorder %s29, 1
      %p204 = por %p202, %p203
      %p206 = scmp.ne.s32.totalorder %s189, %s205
      %p207 = scmp.eq.s32.totalorder %s29, 0
      %p208 = por %p206, %p207
      %s209 = ssub.s32 %s23, %s30
      %p210 = scmp.eq.s32.totalorder %s209, 0
      %s212 = sadd.s32 %s211, 1
      %s213 = scalar_select %p210, %s211, %s212
      %p216 = pneg %p210
      %p217 = scmp.eq.s32.totalorder %s23, 1
      %p218 = por %p216, %p217
      %p219 = scmp.ne.s32.totalorder %s211, %s214
      %p220 = scmp.eq.s32.totalorder %s23, 0
      %p221 = por %p219, %p220
      %p222 = scmp.ne.s32.totalorder %s211, %s214
      %p223 = scmp.eq.s32.totalorder %s28, 1
      %p224 = por %p222, %p223
      %p225 = scmp.ne.s32.totalorder %s214, %s215
      %p226 = scmp.eq.s32.totalorder %s28, 0
      %p227 = por %p225, %p226
      %p228 = scmp.ne.s32.totalorder %s214, %s215
      %p229 = scmp.eq.s32.totalorder %s29, 1
      %p230 = por %p228, %p229
      %p232 = scmp.ne.s32.totalorder %s215, %s231
      %p233 = scmp.eq.s32.totalorder %s29, 0
      %p234 = por %p232, %p233
      %p235 = scmp.le.s32.totalorder 1, %s23
      %p236 = scmp.lt.s32.totalorder %s23, 3
      %p237 = pnand %p235, %p236
      %p238 = pneg %p237
      // Predicated region
      $region9: #{tpu_custom_call.1} parent=5 // pred_check
        _
      $region10: #{tpu_custom_call.1} parent=5 // pred_check_branch
        %240 = sbr.rel (%p237) target = $region12
      $region11: #{tpu_custom_call.1} parent=5 // pred_region
        %s241 = ssub.s32 %s23, 1
        // Predicated region
        $region13: #{tpu_custom_call.1} parent=11 // pred_check
          %p242 = pneg %p70
        $region14: #{tpu_custom_call.1} parent=11 // pred_check_branch
          %244 = sbr.rel (%p242) target = $region16
        $region15: #{tpu_custom_call.1} parent=11 // pred_region
          _
        $region16: #{tpu_custom_call.1} parent=11 // pred_fallthru
          _
        // Predicated region
        $region17: #{tpu_custom_call.1} parent=11 // pred_check
          %p245 = pneg %p91
        $region18: #{tpu_custom_call.1} parent=11 // pred_check_branch
          %247 = sbr.rel (%p245) target = $region20
        $region19: #{tpu_custom_call.1} parent=11 // pred_region
          _
        $region20: #{tpu_custom_call.1} parent=11 // pred_fallthru
          _
        // Predicated region
        $region21: #{tpu_custom_call.1} parent=11 // pred_check
          %p248 = pneg %p112
        $region22: #{tpu_custom_call.1} parent=11 // pred_check_branch
          %250 = sbr.rel (%p248) target = $region24
        $region23: #{tpu_custom_call.1} parent=11 // pred_region
          _
        $region24: #{tpu_custom_call.1} parent=11 // pred_fallthru
          _
        // Predicated region
        $region25: #{tpu_custom_call.1} parent=11 // pred_check
          %p251 = pneg %p133
        $region26: #{tpu_custom_call.1} parent=11 // pred_check_branch
          %253 = sbr.rel (%p251) target = $region28
        $region27: #{tpu_custom_call.1} parent=11 // pred_region
          _
        $region28: #{tpu_custom_call.1} parent=11 // pred_fallthru
          _
        // Predicated region
        $region29: #{tpu_custom_call.1} parent=11 // pred_check
          %p254 = pneg %p154
        $region30: #{tpu_custom_call.1} parent=11 // pred_check_branch
          %256 = sbr.rel (%p254) target = $region32
        $region31: #{tpu_custom_call.1} parent=11 // pred_region
          _
        $region32: #{tpu_custom_call.1} parent=11 // pred_fallthru
          _
        // Predicated region
        $region33: #{tpu_custom_call.1} parent=11 // pred_check
          %p257 = pneg %p175
        $region34: #{tpu_custom_call.1} parent=11 // pred_check_branch
          %259 = sbr.rel (%p257) target = $region36
        $region35: #{tpu_custom_call.1} parent=11 // pred_region
          _
        $region36: #{tpu_custom_call.1} parent=11 // pred_fallthru
          _
      $region12: #{tpu_custom_call.1} parent=5 // pred_fallthru
        _
      %p260 = scmp.lt.s32.totalorder %s23, 2
      // Predicated region
      $region37: #{tpu_custom_call.1} parent=5 // pred_check
        %p261 = pneg %p260
      $region38: #{tpu_custom_call.1} parent=5 // pred_check_branch
        %263 = sbr.rel (%p261) target = $region40
      $region39: #{tpu_custom_call.1} parent=5 // pred_region
        // Predicated region
        $region41: #{tpu_custom_call.1} parent=39 // pred_check
          %p264 = pneg %p43
        $region42: #{tpu_custom_call.1} parent=39 // pred_check_branch
          %266 = sbr.rel (%p264) target = $region44
        $region43: #{tpu_custom_call.1} parent=39 // pred_region
          %p267 = scmp.lt.s32.totalorder %s23, 1
          %s268 = scalar_select %p267, %s23, 1
          %s269 = smul.addr %s268, 72
          %s270 = smul.addr %s269, 4
          %s271 = scalar_lea.vmem %s0, %s270
        $region44: #{tpu_custom_call.1} parent=39 // pred_fallthru
          _
      $region40: #{tpu_custom_call.1} parent=5 // pred_fallthru
        _
      %p272 = scmp.le.s32.totalorder 1, %s23
      %p273 = scmp.lt.s32.totalorder %s23, 3
      %p274 = pnand %p272, %p273
      %p275 = pneg %p274
      // Predicated region
      $region45: #{tpu_custom_call.1} parent=5 // pred_check
        _
      $region46: #{tpu_custom_call.1} parent=5 // pred_check_branch
        %277 = sbr.rel (%p274) target = $region48
      $region47: #{tpu_custom_call.1} parent=5 // pred_region
        %s278 = ssub.s32 %s23, 1
        %p279 = scmp.lt.s32.totalorder %s28, 1
        %s280 = scalar_select %p279, %s28, 1
        %s281 = smul.addr %s280, 72
        %s282 = smul.addr %s281, 4
        %s283 = scalar_lea.vmem %s0, %s282
        %p284 = pneg %p49
        %p285 = pneg %p46
        %p286 = pneg %p70
        %p287 = pneg %p67
        %p288 = pneg %p91
        %p289 = pneg %p88
        %p290 = pneg %p112
        %p291 = pneg %p109
        %p292 = pneg %p133
        %p293 = pneg %p130
        %p294 = pneg %p154
        %p295 = pneg %p151
        %p296 = pneg %p175
        %p297 = pneg %p172
        %p298 = pneg %p201
        %p299 = pneg %p198
        %s300 = sand.u32 %s188, 1
        %s301 = scalar_lea.sflag [#allocation5], %s300
        %s302 = sand.u32 %s188, 1
        %s303 = smul.addr %s302, 32
        %s304 = scalar_lea.vmem [#allocation4], %s303
        %p305 = pneg %p227
        %p306 = pneg %p224
        %s307 = sand.u32 %s214, 1
        %s308 = scalar_lea.sflag [#allocation7], %s307
        %s309 = sand.u32 %s214, 1
        %s310 = smul.addr %s309, 32
        %s311 = scalar_lea.vmem [#allocation6], %s310
        %p312 = scmp.lt.s32.totalorder %s28, 1
        %s313 = scalar_select %p312, %s28, 1
        %s314 = smul.addr %s313, 72
        %s315 = smul.addr %s314, 4
        %s316 = scalar_lea.vmem %s0, %s315
        %v318 = vld [vmem:[%s316] sm:$0xf]
        %v319 = vld [vmem:[%s316 + $0x8] sm:$0xf]
        %v320 = vld [vmem:[%s316 + $0x10] sm:$0xf]
        %v321 = vld [vmem:[%s316 + $0x18] sm:$0xf]
        %v322 = vld [vmem:[%s316 + $0x20] sm:$0xf]
        %v323 = vld [vmem:[%s316 + $0x28] sm:$0xf]
        %v324 = vld [vmem:[%s316 + $0x30] sm:$0xf]
        %v325 = vld [vmem:[%s316 + $0x38] sm:$0xf]
        %v326 = vld [vmem:[%s1] sm:$0x3]
        %s327 = scalar_lea.vmem %s316, 72
        %v328 = vld [vmem:[%s327] sm:$0xf]
        %v329 = vld [vmem:[%s327 + $0x8] sm:$0xf]
        %v330 = vld [vmem:[%s327 + $0x10] sm:$0xf]
        %v331 = vld [vmem:[%s327 + $0x18] sm:$0xf]
        %v332 = vld [vmem:[%s327 + $0x20] sm:$0xf]
        %v333 = vld [vmem:[%s327 + $0x28] sm:$0xf]
        %v334 = vld [vmem:[%s327 + $0x30] sm:$0xf]
        %v335 = vld [vmem:[%s327 + $0x38] sm:$0xf]
        %s336 = scalar_lea.vmem %s1, 2
        %v337 = vld [vmem:[%s336] sm:$0x3]
        %v346 = vunpack.c.l.b16 %v328
        %v347 = vunpack.c.l.b16 %v329
        %v348 = vunpack.c.l.b16 %v330
        %v349 = vunpack.c.l.b16 %v331
        %v350 = vunpack.c.l.b16 %v332
        %v351 = vunpack.c.l.b16 %v333
        %v352 = vunpack.c.l.b16 %v334
        %v353 = vunpack.c.l.b16 %v335
        %v354 = vpack.c.b16 %v347, %v346
        %v355 = vpack.c.b16 %v349, %v348
        %v356 = vpack.c.b16 %v351, %v350
        %v357 = vpack.c.b16 %v353, %v352
        %vm358 = vcmask 31744
        %v360 = vsel %vm358, %v354, 0
        %v363 = vsel %vm358, %v355, 0
        %v366 = vsel %vm358, %v356, 0
        %v369 = vsel %vm358, %v357, 0
        %vm371 = vcmask 1041408
        %v373 = vsel %vm371, %v337, 0
        %375 = vmatpush.bf16.msra.mxu0 0
        %376 = vmatpush.bf16.msra.mxu0 0
        %377 = vmatpush.bf16.msra.mxu0 0
        %378 = vmatpush.bf16.msra.mxu0 0
        %379 = vmatpush.bf16.msra.mxu0 0
        %380 = vmatpush.bf16.msra.mxu0 0
        %381 = vmatpush.bf16.msra.mxu0 0
        %382 = vmatpush.bf16.msra.mxu0 %v373
        %383 = vmatmul.bf16.gmra.mxu0 %v360
        %v384 = vpop.f32.mrf.mxu0
        %v385 = vadd.f32 0.0, %v384
        %v386 = vpop.f32.mrf.mxu0
        %v387 = vadd.f32 0.0, %v386
        %388 = vmatmul.bf16.gmra.mxu0 %v363
        %v389 = vpop.f32.mrf.mxu0
        %v390 = vadd.f32 0.0, %v389
        %v391 = vpop.f32.mrf.mxu0
        %v392 = vadd.f32 0.0, %v391
        %393 = vmatmul.bf16.gmra.mxu0 %v366
        %v394 = vpop.f32.mrf.mxu0
        %v395 = vadd.f32 0.0, %v394
        %v396 = vpop.f32.mrf.mxu0
        %v397 = vadd.f32 0.0, %v396
        %398 = vmatmul.bf16.gmra.mxu0 %v369
        %v399 = vpop.f32.mrf.mxu0
        %v400 = vadd.f32 0.0, %v399
        %v401 = vpop.f32.mrf.mxu0
        %v402 = vadd.f32 0.0, %v401
        %403 = vdwg.mxu0
        %v412 = vunpack.c.l.b16 %v318
        %v413 = vunpack.c.l.b16 %v319
        %v414 = vunpack.c.l.b16 %v320
        %v415 = vunpack.c.l.b16 %v321
        %v416 = vunpack.c.l.b16 %v322
        %v417 = vunpack.c.l.b16 %v323
        %v418 = vunpack.c.l.b16 %v324
        %v419 = vunpack.c.l.b16 %v325
        %v420 = vpack.c.b16 %v413, %v412
        %v421 = vpack.c.b16 %v415, %v414
        %v422 = vpack.c.b16 %v417, %v416
        %v423 = vpack.c.b16 %v419, %v418
        %v425 = vsel %vm358, %v420, 0
        %v428 = vsel %vm358, %v421, 0
        %v431 = vsel %vm358, %v422, 0
        %v434 = vsel %vm358, %v423, 0
        %v437 = vsel %vm371, %v326, 0
        %439 = vmatpush.bf16.msra.mxu0 0
        %440 = vmatpush.bf16.msra.mxu0 0
        %441 = vmatpush.bf16.msra.mxu0 0
        %442 = vmatpush.bf16.msra.mxu0 0
        %443 = vmatpush.bf16.msra.mxu0 0
        %444 = vmatpush.bf16.msra.mxu0 0
        %445 = vmatpush.bf16.msra.mxu0 0
        %446 = vmatpush.bf16.msra.mxu0 %v437
        %447 = vmatmul.bf16.gmra.mxu0 %v425
        %v448 = vpop.f32.mrf.mxu0
        %v449 = vadd.f32 %v385, %v448
        %v450 = vpop.f32.mrf.mxu0
        %v451 = vadd.f32 %v387, %v450
        %452 = vmatmul.bf16.gmra.mxu0 %v428
        %v453 = vpop.f32.mrf.mxu0
        %v454 = vadd.f32 %v390, %v453
        %v455 = vpop.f32.mrf.mxu0
        %v456 = vadd.f32 %v392, %v455
        %457 = vmatmul.bf16.gmra.mxu0 %v431
        %v458 = vpop.f32.mrf.mxu0
        %v459 = vadd.f32 %v395, %v458
        %v460 = vpop.f32.mrf.mxu0
        %v461 = vadd.f32 %v397, %v460
        %462 = vmatmul.bf16.gmra.mxu0 %v434
        %v463 = vpop.f32.mrf.mxu0
        %v464 = vadd.f32 %v400, %v463
        %v465 = vpop.f32.mrf.mxu0
        %v466 = vadd.f32 %v402, %v465
        %467 = vdwg.mxu0
        %v468 = vld [vmem:[%s316] sm:$0xf]
        %v469 = vld [vmem:[%s316 + $0x4] sm:$0x1]
        %v470 = vld [vmem:[%s316 + $0x8] sm:$0xf]
        %v471 = vld [vmem:[%s316 + $0xc] sm:$0x1]
        %v472 = vld [vmem:[%s316 + $0x10] sm:$0xf]
        %v473 = vld [vmem:[%s316 + $0x14] sm:$0x1]
        %v474 = vld [vmem:[%s316 + $0x18] sm:$0xf]
        %v475 = vld [vmem:[%s316 + $0x1c] sm:$0x1]
        %v476 = vld [vmem:[%s316 + $0x20] sm:$0xf]
        %v477 = vld [vmem:[%s316 + $0x24] sm:$0x1]
        %v478 = vld [vmem:[%s316 + $0x28] sm:$0xf]
        %v479 = vld [vmem:[%s316 + $0x2c] sm:$0x1]
        %v480 = vld [vmem:[%s316 + $0x30] sm:$0xf]
        %v481 = vld [vmem:[%s316 + $0x34] sm:$0x1]
        %v482 = vld [vmem:[%s316 + $0x38] sm:$0xf]
        %v483 = vld [vmem:[%s316 + $0x3c] sm:$0x1]
        %vm484 = vsmask.f32 3328
        %vm485 = vsmask.f32 7440
        %vm486 = vmor %vm484, %vm485
        %v488 = vshrl.u32 %v468, 16
        %v490 = vrot.slane %v488, 4
        %v491 = vshll.u32 %v468, 16
        %v493 = vrot.slane %v491, 5
        %v494 = vor.u32 %v490, %v493
        %v495 = vrot.slane %v494, 4
        %v497 = vshll.u32 %v469, 16
        %v499 = vrot.slane %v497, 5
        %v500 = vsel %vm486, %v495, %v499
        %v502 = vshrl.u32 %v470, 16
        %v504 = vrot.slane %v502, 4
        %v505 = vshll.u32 %v470, 16
        %v507 = vrot.slane %v505, 5
        %v508 = vor.u32 %v504, %v507
        %v509 = vrot.slane %v508, 4
        %v511 = vshll.u32 %v471, 16
        %v513 = vrot.slane %v511, 5
        %v514 = vsel %vm486, %v509, %v513
        %v516 = vshrl.u32 %v472, 16
        %v518 = vrot.slane %v516, 4
        %v519 = vshll.u32 %v472, 16
        %v521 = vrot.slane %v519, 5
        %v522 = vor.u32 %v518, %v521
        %v523 = vrot.slane %v522, 4
        %v525 = vshll.u32 %v473, 16
        %v527 = vrot.slane %v525, 5
        %v528 = vsel %vm486, %v523, %v527
        %v530 = vshrl.u32 %v474, 16
        %v532 = vrot.slane %v530, 4
        %v533 = vshll.u32 %v474, 16
        %v535 = vrot.slane %v533, 5
        %v536 = vor.u32 %v532, %v535
        %v537 = vrot.slane %v536, 4
        %v539 = vshll.u32 %v475, 16
        %v541 = vrot.slane %v539, 5
        %v542 = vsel %vm486, %v537, %v541
        %v544 = vshrl.u32 %v476, 16
        %v546 = vrot.slane %v544, 4
        %v547 = vshll.u32 %v476, 16
        %v549 = vrot.slane %v547, 5
        %v550 = vor.u32 %v546, %v549
        %v551 = vrot.slane %v550, 4
        %v553 = vshll.u32 %v477, 16
        %v555 = vrot.slane %v553, 5
        %v556 = vsel %vm486, %v551, %v555
        %v558 = vshrl.u32 %v478, 16
        %v560 = vrot.slane %v558, 4
        %v561 = vshll.u32 %v478, 16
        %v563 = vrot.slane %v561, 5
        %v564 = vor.u32 %v560, %v563
        %v565 = vrot.slane %v564, 4
        %v567 = vshll.u32 %v479, 16
        %v569 = vrot.slane %v567, 5
        %v570 = vsel %vm486, %v565, %v569
        %v572 = vshrl.u32 %v480, 16
        %v574 = vrot.slane %v572, 4
        %v575 = vshll.u32 %v480, 16
        %v577 = vrot.slane %v575, 5
        %v578 = vor.u32 %v574, %v577
        %v579 = vrot.slane %v578, 4
        %v581 = vshll.u32 %v481, 16
        %v583 = vrot.slane %v581, 5
        %v584 = vsel %vm486, %v579, %v583
        %v586 = vshrl.u32 %v482, 16
        %v588 = vrot.slane %v586, 4
        %v589 = vshll.u32 %v482, 16
        %v591 = vrot.slane %v589, 5
        %v592 = vor.u32 %v588, %v591
        %v593 = vrot.slane %v592, 4
        %v595 = vshll.u32 %v483, 16
        %v597 = vrot.slane %v595, 5
        %v598 = vsel %vm486, %v593, %v597
        %s599 = scalar_lea.vmem %s1, 4
        %v600 = vld [vmem:[%s599] sm:$0x3]
        %v601 = vunpack.c.l.b16 %v500
        %v602 = vunpack.c.l.b16 %v514
        %v603 = vunpack.c.l.b16 %v528
        %v604 = vunpack.c.l.b16 %v542
        %v605 = vunpack.c.l.b16 %v556
        %v606 = vunpack.c.l.b16 %v570
        %v607 = vunpack.c.l.b16 %v584
        %v608 = vunpack.c.l.b16 %v598
        %v609 = vpack.c.b16 %v602, %v601
        %v610 = vpack.c.b16 %v604, %v603
        %v611 = vpack.c.b16 %v606, %v605
        %v612 = vpack.c.b16 %v608, %v607
        %v614 = vsel %vm358, %v609, 0
        %v617 = vsel %vm358, %v610, 0
        %v620 = vsel %vm358, %v611, 0
        %v623 = vsel %vm358, %v612, 0
        %v626 = vsel %vm371, %v600, 0
        %628 = vmatpush.bf16.msra.mxu0 0
        %629 = vmatpush.bf16.msra.mxu0 0
        %630 = vmatpush.bf16.msra.mxu0 0
        %631 = vmatpush.bf16.msra.mxu0 0
        %632 = vmatpush.bf16.msra.mxu0 0
        %633 = vmatpush.bf16.msra.mxu0 0
        %634 = vmatpush.bf16.msra.mxu0 0
        %635 = vmatpush.bf16.msra.mxu0 %v626
        %636 = vmatmul.bf16.gmra.mxu0 %v614
        %v637 = vpop.f32.mrf.mxu0
        %v638 = vadd.f32 0.0, %v637
        %v639 = vpop.f32.mrf.mxu0
        %v640 = vadd.f32 0.0, %v639
        %641 = vmatmul.bf16.gmra.mxu0 %v617
        %v642 = vpop.f32.mrf.mxu0
        %v643 = vadd.f32 0.0, %v642
        %v644 = vpop.f32.mrf.mxu0
        %v645 = vadd.f32 0.0, %v644
        %646 = vmatmul.bf16.gmra.mxu0 %v620
        %v647 = vpop.f32.mrf.mxu0
        %v648 = vadd.f32 0.0, %v647
        %v649 = vpop.f32.mrf.mxu0
        %v650 = vadd.f32 0.0, %v649
        %651 = vmatmul.bf16.gmra.mxu0 %v623
        %v652 = vpop.f32.mrf.mxu0
        %v653 = vadd.f32 0.0, %v652
        %v654 = vpop.f32.mrf.mxu0
        %v655 = vadd.f32 0.0, %v654
        %656 = vdwg.mxu0
        %v657 = vadd.f32 %v449, %v638
        %v658 = vadd.f32 %v451, %v640
        %v659 = vadd.f32 %v454, %v643
        %v660 = vadd.f32 %v456, %v645
        %v661 = vadd.f32 %v459, %v648
        %v662 = vadd.f32 %v461, %v650
        %v663 = vadd.f32 %v464, %v653
        %v664 = vadd.f32 %v466, %v655
        %s665 = scalar_lea.vmem %s316, 144
        %v666 = vld [vmem:[%s665] sm:$0xf]
        %v667 = vld [vmem:[%s665 + $0x8] sm:$0xf]
        %v668 = vld [vmem:[%s665 + $0x10] sm:$0xf]
        %v669 = vld [vmem:[%s665 + $0x18] sm:$0xf]
        %v670 = vld [vmem:[%s665 + $0x20] sm:$0xf]
        %v671 = vld [vmem:[%s665 + $0x28] sm:$0xf]
        %v672 = vld [vmem:[%s665 + $0x30] sm:$0xf]
        %v673 = vld [vmem:[%s665 + $0x38] sm:$0xf]
        %s674 = scalar_lea.vmem %s1, 6
        %v675 = vld [vmem:[%s674] sm:$0x3]
        %v684 = vunpack.c.l.b16 %v666
        %v685 = vunpack.c.l.b16 %v667
        %v686 = vunpack.c.l.b16 %v668
        %v687 = vunpack.c.l.b16 %v669
        %v688 = vunpack.c.l.b16 %v670
        %v689 = vunpack.c.l.b16 %v671
        %v690 = vunpack.c.l.b16 %v672
        %v691 = vunpack.c.l.b16 %v673
        %v692 = vpack.c.b16 %v685, %v684
        %v693 = vpack.c.b16 %v687, %v686
        %v694 = vpack.c.b16 %v689, %v688
        %v695 = vpack.c.b16 %v691, %v690
        %v697 = vsel %vm358, %v692, 0
        %v700 = vsel %vm358, %v693, 0
        %v703 = vsel %vm358, %v694, 0
        %v706 = vsel %vm358, %v695, 0
        %v709 = vsel %vm371, %v675, 0
        %711 = vmatpush.bf16.msra.mxu0 0
        %712 = vmatpush.bf16.msra.mxu0 0
        %713 = vmatpush.bf16.msra.mxu0 0
        %714 = vmatpush.bf16.msra.mxu0 0
        %715 = vmatpush.bf16.msra.mxu0 0
        %716 = vmatpush.bf16.msra.mxu0 0
        %717 = vmatpush.bf16.msra.mxu0 0
        %718 = vmatpush.bf16.msra.mxu0 %v709
        %719 = vmatmul.bf16.gmra.mxu0 %v697
        %v720 = vpop.f32.mrf.mxu0
        %v721 = vadd.f32 0.0, %v720
        %v722 = vpop.f32.mrf.mxu0
        %v723 = vadd.f32 0.0, %v722
        %724 = vmatmul.bf16.gmra.mxu0 %v700
        %v725 = vpop.f32.mrf.mxu0
        %v726 = vadd.f32 0.0, %v725
        %v727 = vpop.f32.mrf.mxu0
        %v728 = vadd.f32 0.0, %v727
        %729 = vmatmul.bf16.gmra.mxu0 %v703
        %v730 = vpop.f32.mrf.mxu0
        %v731 = vadd.f32 0.0, %v730
        %v732 = vpop.f32.mrf.mxu0
        %v733 = vadd.f32 0.0, %v732
        %734 = vmatmul.bf16.gmra.mxu0 %v706
        %v735 = vpop.f32.mrf.mxu0
        %v736 = vadd.f32 0.0, %v735
        %v737 = vpop.f32.mrf.mxu0
        %v738 = vadd.f32 0.0, %v737
        %739 = vdwg.mxu0
        %v740 = vadd.f32 %v657, %v721
        %v741 = vadd.f32 %v658, %v723
        %v742 = vadd.f32 %v659, %v726
        %v743 = vadd.f32 %v660, %v728
        %v744 = vadd.f32 %v661, %v731
        %v745 = vadd.f32 %v662, %v733
        %v746 = vadd.f32 %v663, %v736
        %v747 = vadd.f32 %v664, %v738
        %s748 = scalar_lea.vmem %s316, 216
        %v749 = vld [vmem:[%s748] sm:$0xf]
        %v750 = vld [vmem:[%s748 + $0x8] sm:$0xf]
        %v751 = vld [vmem:[%s748 + $0x10] sm:$0xf]
        %v752 = vld [vmem:[%s748 + $0x18] sm:$0xf]
        %v753 = vld [vmem:[%s748 + $0x20] sm:$0xf]
        %v754 = vld [vmem:[%s748 + $0x28] sm:$0xf]
        %v755 = vld [vmem:[%s748 + $0x30] sm:$0xf]
        %v756 = vld [vmem:[%s748 + $0x38] sm:$0xf]
        %s757 = scalar_lea.vmem %s1, 8
        %v758 = vld [vmem:[%s757] sm:$0x3]
        %v767 = vunpack.c.l.b16 %v749
        %v768 = vunpack.c.l.b16 %v750
        %v769 = vunpack.c.l.b16 %v751
        %v770 = vunpack.c.l.b16 %v752
        %v771 = vunpack.c.l.b16 %v753
        %v772 = vunpack.c.l.b16 %v754
        %v773 = vunpack.c.l.b16 %v755
        %v774 = vunpack.c.l.b16 %v756
        %v775 = vpack.c.b16 %v768, %v767
        %v776 = vpack.c.b16 %v770, %v769
        %v777 = vpack.c.b16 %v772, %v771
        %v778 = vpack.c.b16 %v774, %v773
        %v780 = vsel %vm358, %v775, 0
        %v783 = vsel %vm358, %v776, 0
        %v786 = vsel %vm358, %v777, 0
        %v789 = vsel %vm358, %v778, 0
        %v792 = vsel %vm371, %v758, 0
        %794 = vmatpush.bf16.msra.mxu0 0
        %795 = vmatpush.bf16.msra.mxu0 0
        %796 = vmatpush.bf16.msra.mxu0 0
        %797 = vmatpush.bf16.msra.mxu0 0
        %798 = vmatpush.bf16.msra.mxu0 0
        %799 = vmatpush.bf16.msra.mxu0 0
        %800 = vmatpush.bf16.msra.mxu0 0
        %801 = vmatpush.bf16.msra.mxu0 %v792
        %802 = vmatmul.bf16.gmra.mxu0 %v780
        %v803 = vpop.f32.mrf.mxu0
        %v804 = vadd.f32 0.0, %v803
        %v805 = vpop.f32.mrf.mxu0
        %v806 = vadd.f32 0.0, %v805
        %807 = vmatmul.bf16.gmra.mxu0 %v783
        %v808 = vpop.f32.mrf.mxu0
        %v809 = vadd.f32 0.0, %v808
        %v810 = vpop.f32.mrf.mxu0
        %v811 = vadd.f32 0.0, %v810
        %812 = vmatmul.bf16.gmra.mxu0 %v786
        %v813 = vpop.f32.mrf.mxu0
        %v814 = vadd.f32 0.0, %v813
        %v815 = vpop.f32.mrf.mxu0
        %v816 = vadd.f32 0.0, %v815
        %817 = vmatmul.bf16.gmra.mxu0 %v789
        %v818 = vpop.f32.mrf.mxu0
        %v819 = vadd.f32 0.0, %v818
        %v820 = vpop.f32.mrf.mxu0
        %v821 = vadd.f32 0.0, %v820
        %822 = vdwg.mxu0
        %v823 = vadd.f32 %v740, %v804
        %v824 = vadd.f32 %v741, %v806
        %v825 = vadd.f32 %v742, %v809
        %v826 = vadd.f32 %v743, %v811
        %v827 = vadd.f32 %v744, %v814
        %v828 = vadd.f32 %v745, %v816
        %v829 = vadd.f32 %v746, %v819
        %v830 = vadd.f32 %v747, %v821
        %v831 = vld [vmem:[%s665] sm:$0xf]
        %v832 = vld [vmem:[%s665 + $0x4] sm:$0x1]
        %v833 = vld [vmem:[%s665 + $0x8] sm:$0xf]
        %v834 = vld [vmem:[%s665 + $0xc] sm:$0x1]
        %v835 = vld [vmem:[%s665 + $0x10] sm:$0xf]
        %v836 = vld [vmem:[%s665 + $0x14] sm:$0x1]
        %v837 = vld [vmem:[%s665 + $0x18] sm:$0xf]
        %v838 = vld [vmem:[%s665 + $0x1c] sm:$0x1]
        %v839 = vld [vmem:[%s665 + $0x20] sm:$0xf]
        %v840 = vld [vmem:[%s665 + $0x24] sm:$0x1]
        %v841 = vld [vmem:[%s665 + $0x28] sm:$0xf]
        %v842 = vld [vmem:[%s665 + $0x2c] sm:$0x1]
        %v843 = vld [vmem:[%s665 + $0x30] sm:$0xf]
        %v844 = vld [vmem:[%s665 + $0x34] sm:$0x1]
        %v845 = vld [vmem:[%s665 + $0x38] sm:$0xf]
        %v846 = vld [vmem:[%s665 + $0x3c] sm:$0x1]
        %v848 = vshrl.u32 %v831, 16
        %v850 = vrot.slane %v848, 4
        %v851 = vshll.u32 %v831, 16
        %v853 = vrot.slane %v851, 5
        %v854 = vor.u32 %v850, %v853
        %v855 = vrot.slane %v854, 4
        %v857 = vshll.u32 %v832, 16
        %v859 = vrot.slane %v857, 5
        %v860 = vsel %vm486, %v855, %v859
        %v862 = vshrl.u32 %v833, 16
        %v864 = vrot.slane %v862, 4
        %v865 = vshll.u32 %v833, 16
        %v867 = vrot.slane %v865, 5
        %v868 = vor.u32 %v864, %v867
        %v869 = vrot.slane %v868, 4
        %v871 = vshll.u32 %v834, 16
        %v873 = vrot.slane %v871, 5
        %v874 = vsel %vm486, %v869, %v873
        %v876 = vshrl.u32 %v835, 16
        %v878 = vrot.slane %v876, 4
        %v879 = vshll.u32 %v835, 16
        %v881 = vrot.slane %v879, 5
        %v882 = vor.u32 %v878, %v881
        %v883 = vrot.slane %v882, 4
        %v885 = vshll.u32 %v836, 16
        %v887 = vrot.slane %v885, 5
        %v888 = vsel %vm486, %v883, %v887
        %v890 = vshrl.u32 %v837, 16
        %v892 = vrot.slane %v890, 4
        %v893 = vshll.u32 %v837, 16
        %v895 = vrot.slane %v893, 5
        %v896 = vor.u32 %v892, %v895
        %v897 = vrot.slane %v896, 4
        %v899 = vshll.u32 %v838, 16
        %v901 = vrot.slane %v899, 5
        %v902 = vsel %vm486, %v897, %v901
        %v904 = vshrl.u32 %v839, 16
        %v906 = vrot.slane %v904, 4
        %v907 = vshll.u32 %v839, 16
        %v909 = vrot.slane %v907, 5
        %v910 = vor.u32 %v906, %v909
        %v911 = vrot.slane %v910, 4
        %v913 = vshll.u32 %v840, 16
        %v915 = vrot.slane %v913, 5
        %v916 = vsel %vm486, %v911, %v915
        %v918 = vshrl.u32 %v841, 16
        %v920 = vrot.slane %v918, 4
        %v921 = vshll.u32 %v841, 16
        %v923 = vrot.slane %v921, 5
        %v924 = vor.u32 %v920, %v923
        %v925 = vrot.slane %v924, 4
        %v927 = vshll.u32 %v842, 16
        %v929 = vrot.slane %v927, 5
        %v930 = vsel %vm486, %v925, %v929
        %v932 = vshrl.u32 %v843, 16
        %v934 = vrot.slane %v932, 4
        %v935 = vshll.u32 %v843, 16
        %v937 = vrot.slane %v935, 5
        %v938 = vor.u32 %v934, %v937
        %v939 = vrot.slane %v938, 4
        %v941 = vshll.u32 %v844, 16
        %v943 = vrot.slane %v941, 5
        %v944 = vsel %vm486, %v939, %v943
        %v946 = vshrl.u32 %v845, 16
        %v948 = vrot.slane %v946, 4
        %v949 = vshll.u32 %v845, 16
        %v951 = vrot.slane %v949, 5
        %v952 = vor.u32 %v948, %v951
        %v953 = vrot.slane %v952, 4
        %v955 = vshll.u32 %v846, 16
        %v957 = vrot.slane %v955, 5
        %v958 = vsel %vm486, %v953, %v957
        %s959 = scalar_lea.vmem %s1, 10
        %v960 = vld [vmem:[%s959] sm:$0x3]
        %v961 = vunpack.c.l.b16 %v860
        %v962 = vunpack.c.l.b16 %v874
        %v963 = vunpack.c.l.b16 %v888
        %v964 = vunpack.c.l.b16 %v902
        %v965 = vunpack.c.l.b16 %v916
        %v966 = vunpack.c.l.b16 %v930
        %v967 = vunpack.c.l.b16 %v944
        %v968 = vunpack.c.l.b16 %v958
        %v969 = vpack.c.b16 %v962, %v961
        %v970 = vpack.c.b16 %v964, %v963
        %v971 = vpack.c.b16 %v966, %v965
        %v972 = vpack.c.b16 %v968, %v967
        %v974 = vsel %vm358, %v969, 0
        %v977 = vsel %vm358, %v970, 0
        %v980 = vsel %vm358, %v971, 0
        %v983 = vsel %vm358, %v972, 0
        %v986 = vsel %vm371, %v960, 0
        %988 = vmatpush.bf16.msra.mxu0 0
        %989 = vmatpush.bf16.msra.mxu0 0
        %990 = vmatpush.bf16.msra.mxu0 0
        %991 = vmatpush.bf16.msra.mxu0 0
        %992 = vmatpush.bf16.msra.mxu0 0
        %993 = vmatpush.bf16.msra.mxu0 0
        %994 = vmatpush.bf16.msra.mxu0 0
        %995 = vmatpush.bf16.msra.mxu0 %v986
        %996 = vmatmul.bf16.gmra.mxu0 %v974
        %v997 = vpop.f32.mrf.mxu0
        %v998 = vadd.f32 0.0, %v997
        %v999 = vpop.f32.mrf.mxu0
        %v1000 = vadd.f32 0.0, %v999
        %1001 = vmatmul.bf16.gmra.mxu0 %v977
        %v1002 = vpop.f32.mrf.mxu0
        %v1003 = vadd.f32 0.0, %v1002
        %v1004 = vpop.f32.mrf.mxu0
        %v1005 = vadd.f32 0.0, %v1004
        %1006 = vmatmul.bf16.gmra.mxu0 %v980
        %v1007 = vpop.f32.mrf.mxu0
        %v1008 = vadd.f32 0.0, %v1007
        %v1009 = vpop.f32.mrf.mxu0
        %v1010 = vadd.f32 0.0, %v1009
        %1011 = vmatmul.bf16.gmra.mxu0 %v983
        %v1012 = vpop.f32.mrf.mxu0
        %v1013 = vadd.f32 0.0, %v1012
        %v1014 = vpop.f32.mrf.mxu0
        %v1015 = vadd.f32 0.0, %v1014
        %1016 = vdwg.mxu0
        %v1017 = vadd.f32 %v823, %v998
        %v1018 = vadd.f32 %v824, %v1000
        %v1019 = vadd.f32 %v825, %v1003
        %v1020 = vadd.f32 %v826, %v1005
        %v1021 = vadd.f32 %v827, %v1008
        %v1022 = vadd.f32 %v828, %v1010
        %v1023 = vadd.f32 %v829, %v1013
        %v1024 = vadd.f32 %v830, %v1015
        %s1025 = scalar_lea.vmem %s316, 8
        %v1026 = vld [vmem:[%s1025] sm:$0xf]
        %v1027 = vld [vmem:[%s1025 + $0x8] sm:$0xf]
        %v1028 = vld [vmem:[%s1025 + $0x10] sm:$0xf]
        %v1029 = vld [vmem:[%s1025 + $0x18] sm:$0xf]
        %v1030 = vld [vmem:[%s1025 + $0x20] sm:$0xf]
        %v1031 = vld [vmem:[%s1025 + $0x28] sm:$0xf]
        %v1032 = vld [vmem:[%s1025 + $0x30] sm:$0xf]
        %v1033 = vld [vmem:[%s1025 + $0x38] sm:$0xf]
        %s1034 = scalar_lea.vmem %s1, 12
        %v1035 = vld [vmem:[%s1034] sm:$0x3]
        %v1044 = vunpack.c.l.b16 %v1026
        %v1045 = vunpack.c.l.b16 %v1027
        %v1046 = vunpack.c.l.b16 %v1028
        %v1047 = vunpack.c.l.b16 %v1029
        %v1048 = vunpack.c.l.b16 %v1030
        %v1049 = vunpack.c.l.b16 %v1031
        %v1050 = vunpack.c.l.b16 %v1032
        %v1051 = vunpack.c.l.b16 %v1033
        %v1052 = vpack.c.b16 %v1045, %v1044
        %v1053 = vpack.c.b16 %v1047, %v1046
        %v1054 = vpack.c.b16 %v1049, %v1048
        %v1055 = vpack.c.b16 %v1051, %v1050
        %v1057 = vsel %vm358, %v1052, 0
        %v1060 = vsel %vm358, %v1053, 0
        %v1063 = vsel %vm358, %v1054, 0
        %v1066 = vsel %vm358, %v1055, 0
        %v1069 = vsel %vm371, %v1035, 0
        %1071 = vmatpush.bf16.msra.mxu0 0
        %1072 = vmatpush.bf16.msra.mxu0 0
        %1073 = vmatpush.bf16.msra.mxu0 0
        %1074 = vmatpush.bf16.msra.mxu0 0
        %1075 = vmatpush.bf16.msra.mxu0 0
        %1076 = vmatpush.bf16.msra.mxu0 0
        %1077 = vmatpush.bf16.msra.mxu0 0
        %1078 = vmatpush.bf16.msra.mxu0 %v1069
        %1079 = vmatmul.bf16.gmra.mxu0 %v1057
        %v1080 = vpop.f32.mrf.mxu0
        %v1081 = vadd.f32 0.0, %v1080
        %v1082 = vpop.f32.mrf.mxu0
        %v1083 = vadd.f32 0.0, %v1082
        %1084 = vmatmul.bf16.gmra.mxu0 %v1060
        %v1085 = vpop.f32.mrf.mxu0
        %v1086 = vadd.f32 0.0, %v1085
        %v1087 = vpop.f32.mrf.mxu0
        %v1088 = vadd.f32 0.0, %v1087
        %1089 = vmatmul.bf16.gmra.mxu0 %v1063
        %v1090 = vpop.f32.mrf.mxu0
        %v1091 = vadd.f32 0.0, %v1090
        %v1092 = vpop.f32.mrf.mxu0
        %v1093 = vadd.f32 0.0, %v1092
        %1094 = vmatmul.bf16.gmra.mxu0 %v1066
        %v1095 = vpop.f32.mrf.mxu0
        %v1096 = vadd.f32 0.0, %v1095
        %v1097 = vpop.f32.mrf.mxu0
        %v1098 = vadd.f32 0.0, %v1097
        %1099 = vdwg.mxu0
        %v1100 = vadd.f32 %v1017, %v1081
        %v1101 = vadd.f32 %v1018, %v1083
        %v1102 = vadd.f32 %v1019, %v1086
        %v1103 = vadd.f32 %v1020, %v1088
        %v1104 = vadd.f32 %v1021, %v1091
        %v1105 = vadd.f32 %v1022, %v1093
        %v1106 = vadd.f32 %v1023, %v1096
        %v1107 = vadd.f32 %v1024, %v1098
        %s1108 = scalar_lea.vmem %s316, 80
        %v1109 = vld [vmem:[%s1108] sm:$0xf]
        %v1110 = vld [vmem:[%s1108 + $0x8] sm:$0xf]
        %v1111 = vld [vmem:[%s1108 + $0x10] sm:$0xf]
        %v1112 = vld [vmem:[%s1108 + $0x18] sm:$0xf]
        %v1113 = vld [vmem:[%s1108 + $0x20] sm:$0xf]
        %v1114 = vld [vmem:[%s1108 + $0x28] sm:$0xf]
        %v1115 = vld [vmem:[%s1108 + $0x30] sm:$0xf]
        %v1116 = vld [vmem:[%s1108 + $0x38] sm:$0xf]
        %s1117 = scalar_lea.vmem %s1, 14
        %v1118 = vld [vmem:[%s1117] sm:$0x3]
        %v1127 = vunpack.c.l.b16 %v1109
        %v1128 = vunpack.c.l.b16 %v1110
        %v1129 = vunpack.c.l.b16 %v1111
        %v1130 = vunpack.c.l.b16 %v1112
        %v1131 = vunpack.c.l.b16 %v1113
        %v1132 = vunpack.c.l.b16 %v1114
        %v1133 = vunpack.c.l.b16 %v1115
        %v1134 = vunpack.c.l.b16 %v1116
        %v1135 = vpack.c.b16 %v1128, %v1127
        %v1136 = vpack.c.b16 %v1130, %v1129
        %v1137 = vpack.c.b16 %v1132, %v1131
        %v1138 = vpack.c.b16 %v1134, %v1133
        %v1140 = vsel %vm358, %v1135, 0
        %v1143 = vsel %vm358, %v1136, 0
        %v1146 = vsel %vm358, %v1137, 0
        %v1149 = vsel %vm358, %v1138, 0
        %v1152 = vsel %vm371, %v1118, 0
        %1154 = vmatpush.bf16.msra.mxu0 0
        %1155 = vmatpush.bf16.msra.mxu0 0
        %1156 = vmatpush.bf16.msra.mxu0 0
        %1157 = vmatpush.bf16.msra.mxu0 0
        %1158 = vmatpush.bf16.msra.mxu0 0
        %1159 = vmatpush.bf16.msra.mxu0 0
        %1160 = vmatpush.bf16.msra.mxu0 0
        %1161 = vmatpush.bf16.msra.mxu0 %v1152
        %1162 = vmatmul.bf16.gmra.mxu0 %v1140
        %v1163 = vpop.f32.mrf.mxu0
        %v1164 = vadd.f32 0.0, %v1163
        %v1165 = vpop.f32.mrf.mxu0
        %v1166 = vadd.f32 0.0, %v1165
        %1167 = vmatmul.bf16.gmra.mxu0 %v1143
        %v1168 = vpop.f32.mrf.mxu0
        %v1169 = vadd.f32 0.0, %v1168
        %v1170 = vpop.f32.mrf.mxu0
        %v1171 = vadd.f32 0.0, %v1170
        %1172 = vmatmul.bf16.gmra.mxu0 %v1146
        %v1173 = vpop.f32.mrf.mxu0
        %v1174 = vadd.f32 0.0, %v1173
        %v1175 = vpop.f32.mrf.mxu0
        %v1176 = vadd.f32 0.0, %v1175
        %1177 = vmatmul.bf16.gmra.mxu0 %v1149
        %v1178 = vpop.f32.mrf.mxu0
        %v1179 = vadd.f32 0.0, %v1178
        %v1180 = vpop.f32.mrf.mxu0
        %v1181 = vadd.f32 0.0, %v1180
        %1182 = vdwg.mxu0
        %v1183 = vadd.f32 %v1100, %v1164
        %v1184 = vadd.f32 %v1101, %v1166
        %v1185 = vadd.f32 %v1102, %v1169
        %v1186 = vadd.f32 %v1103, %v1171
        %v1187 = vadd.f32 %v1104, %v1174
        %v1188 = vadd.f32 %v1105, %v1176
        %v1189 = vadd.f32 %v1106, %v1179
        %v1190 = vadd.f32 %v1107, %v1181
        %v1191 = vld [vmem:[%s1025] sm:$0xf]
        %v1192 = vld [vmem:[%s1025 + $0x4] sm:$0x1]
        %v1193 = vld [vmem:[%s1025 + $0x8] sm:$0xf]
        %v1194 = vld [vmem:[%s1025 + $0xc] sm:$0x1]
        %v1195 = vld [vmem:[%s1025 + $0x10] sm:$0xf]
        %v1196 = vld [vmem:[%s1025 + $0x14] sm:$0x1]
        %v1197 = vld [vmem:[%s1025 + $0x18] sm:$0xf]
        %v1198 = vld [vmem:[%s1025 + $0x1c] sm:$0x1]
        %v1199 = vld [vmem:[%s1025 + $0x20] sm:$0xf]
        %v1200 = vld [vmem:[%s1025 + $0x24] sm:$0x1]
        %v1201 = vld [vmem:[%s1025 + $0x28] sm:$0xf]
        %v1202 = vld [vmem:[%s1025 + $0x2c] sm:$0x1]
        %v1203 = vld [vmem:[%s1025 + $0x30] sm:$0xf]
        %v1204 = vld [vmem:[%s1025 + $0x34] sm:$0x1]
        %v1205 = vld [vmem:[%s1025 + $0x38] sm:$0xf]
        %v1206 = vld [vmem:[%s1025 + $0x3c] sm:$0x1]
        %v1208 = vshrl.u32 %v1191, 16
        %v1210 = vrot.slane %v1208, 4
        %v1211 = vshll.u32 %v1191, 16
        %v1213 = vrot.slane %v1211, 5
        %v1214 = vor.u32 %v1210, %v1213
        %v1215 = vrot.slane %v1214, 4
        %v1217 = vshll.u32 %v1192, 16
        %v1219 = vrot.slane %v1217, 5
        %v1220 = vsel %vm486, %v1215, %v1219
        %v1222 = vshrl.u32 %v1193, 16
        %v1224 = vrot.slane %v1222, 4
        %v1225 = vshll.u32 %v1193, 16
        %v1227 = vrot.slane %v1225, 5
        %v1228 = vor.u32 %v1224, %v1227
        %v1229 = vrot.slane %v1228, 4
        %v1231 = vshll.u32 %v1194, 16
        %v1233 = vrot.slane %v1231, 5
        %v1234 = vsel %vm486, %v1229, %v1233
        %v1236 = vshrl.u32 %v1195, 16
        %v1238 = vrot.slane %v1236, 4
        %v1239 = vshll.u32 %v1195, 16
        %v1241 = vrot.slane %v1239, 5
        %v1242 = vor.u32 %v1238, %v1241
        %v1243 = vrot.slane %v1242, 4
        %v1245 = vshll.u32 %v1196, 16
        %v1247 = vrot.slane %v1245, 5
        %v1248 = vsel %vm486, %v1243, %v1247
        %v1250 = vshrl.u32 %v1197, 16
        %v1252 = vrot.slane %v1250, 4
        %v1253 = vshll.u32 %v1197, 16
        %v1255 = vrot.slane %v1253, 5
        %v1256 = vor.u32 %v1252, %v1255
        %v1257 = vrot.slane %v1256, 4
        %v1259 = vshll.u32 %v1198, 16
        %v1261 = vrot.slane %v1259, 5
        %v1262 = vsel %vm486, %v1257, %v1261
        %v1264 = vshrl.u32 %v1199, 16
        %v1266 = vrot.slane %v1264, 4
        %v1267 = vshll.u32 %v1199, 16
        %v1269 = vrot.slane %v1267, 5
        %v1270 = vor.u32 %v1266, %v1269
        %v1271 = vrot.slane %v1270, 4
        %v1273 = vshll.u32 %v1200, 16
        %v1275 = vrot.slane %v1273, 5
        %v1276 = vsel %vm486, %v1271, %v1275
        %v1278 = vshrl.u32 %v1201, 16
        %v1280 = vrot.slane %v1278, 4
        %v1281 = vshll.u32 %v1201, 16
        %v1283 = vrot.slane %v1281, 5
        %v1284 = vor.u32 %v1280, %v1283
        %v1285 = vrot.slane %v1284, 4
        %v1287 = vshll.u32 %v1202, 16
        %v1289 = vrot.slane %v1287, 5
        %v1290 = vsel %vm486, %v1285, %v1289
        %v1292 = vshrl.u32 %v1203, 16
        %v1294 = vrot.slane %v1292, 4
        %v1295 = vshll.u32 %v1203, 16
        %v1297 = vrot.slane %v1295, 5
        %v1298 = vor.u32 %v1294, %v1297
        %v1299 = vrot.slane %v1298, 4
        %v1301 = vshll.u32 %v1204, 16
        %v1303 = vrot.slane %v1301, 5
        %v1304 = vsel %vm486, %v1299, %v1303
        %v1306 = vshrl.u32 %v1205, 16
        %v1308 = vrot.slane %v1306, 4
        %v1309 = vshll.u32 %v1205, 16
        %v1311 = vrot.slane %v1309, 5
        %v1312 = vor.u32 %v1308, %v1311
        %v1313 = vrot.slane %v1312, 4
        %v1315 = vshll.u32 %v1206, 16
        %v1317 = vrot.slane %v1315, 5
        %v1318 = vsel %vm486, %v1313, %v1317
        %s1319 = scalar_lea.vmem %s1, 16
        %v1320 = vld [vmem:[%s1319] sm:$0x3]
        %v1321 = vunpack.c.l.b16 %v1220
        %v1322 = vunpack.c.l.b16 %v1234
        %v1323 = vunpack.c.l.b16 %v1248
        %v1324 = vunpack.c.l.b16 %v1262
        %v1325 = vunpack.c.l.b16 %v1276
        %v1326 = vunpack.c.l.b16 %v1290
        %v1327 = vunpack.c.l.b16 %v1304
        %v1328 = vunpack.c.l.b16 %v1318
        %v1329 = vpack.c.b16 %v1322, %v1321
        %v1330 = vpack.c.b16 %v1324, %v1323
        %v1331 = vpack.c.b16 %v1326, %v1325
        %v1332 = vpack.c.b16 %v1328, %v1327
        %v1334 = vsel %vm358, %v1329, 0
        %v1337 = vsel %vm358, %v1330, 0
        %v1340 = vsel %vm358, %v1331, 0
        %v1343 = vsel %vm358, %v1332, 0
        %v1346 = vsel %vm371, %v1320, 0
        %1348 = vmatpush.bf16.msra.mxu0 0
        %1349 = vmatpush.bf16.msra.mxu0 0
        %1350 = vmatpush.bf16.msra.mxu0 0
        %1351 = vmatpush.bf16.msra.mxu0 0
        %1352 = vmatpush.bf16.msra.mxu0 0
        %1353 = vmatpush.bf16.msra.mxu0 0
        %1354 = vmatpush.bf16.msra.mxu0 0
        %1355 = vmatpush.bf16.msra.mxu0 %v1346
        %1356 = vmatmul.bf16.gmra.mxu0 %v1334
        %v1357 = vpop.f32.mrf.mxu0
        %v1358 = vadd.f32 0.0, %v1357
        %v1359 = vpop.f32.mrf.mxu0
        %v1360 = vadd.f32 0.0, %v1359
        %1361 = vmatmul.bf16.gmra.mxu0 %v1337
        %v1362 = vpop.f32.mrf.mxu0
        %v1363 = vadd.f32 0.0, %v1362
        %v1364 = vpop.f32.mrf.mxu0
        %v1365 = vadd.f32 0.0, %v1364
        %1366 = vmatmul.bf16.gmra.mxu0 %v1340
        %v1367 = vpop.f32.mrf.mxu0
        %v1368 = vadd.f32 0.0, %v1367
        %v1369 = vpop.f32.mrf.mxu0
        %v1370 = vadd.f32 0.0, %v1369
        %1371 = vmatmul.bf16.gmra.mxu0 %v1343
        %v1372 = vpop.f32.mrf.mxu0
        %v1373 = vadd.f32 0.0, %v1372
        %v1374 = vpop.f32.mrf.mxu0
        %v1375 = vadd.f32 0.0, %v1374
        %1376 = vdwg.mxu0
        %v1377 = vadd.f32 %v1183, %v1358
        %v1378 = vadd.f32 %v1184, %v1360
        %v1379 = vadd.f32 %v1185, %v1363
        %v1380 = vadd.f32 %v1186, %v1365
        %v1381 = vadd.f32 %v1187, %v1368
        %v1382 = vadd.f32 %v1188, %v1370
        %v1383 = vadd.f32 %v1189, %v1373
        %v1384 = vadd.f32 %v1190, %v1375
        %v1385 = vld [vmem:[%s2] sm:$0x3]
        %v1386 = vperm.slane %v1385, 0
        %v1387 = vmul.f32 %v1377, %v1386
        %v1388 = vmul.f32 %v1378, %v1386
        %v1389 = vmul.f32 %v1379, %v1386
        %v1390 = vmul.f32 %v1380, %v1386
        %v1391 = vmul.f32 %v1381, %v1386
        %v1392 = vmul.f32 %v1382, %v1386
        %v1393 = vmul.f32 %v1383, %v1386
        %v1394 = vmul.f32 %v1384, %v1386
        %v1395 = vperm.slane %v1385, 1
        %v1396 = vadd.f32 %v1387, %v1395
        %v1397 = vadd.f32 %v1388, %v1395
        %v1398 = vadd.f32 %v1389, %v1395
        %v1399 = vadd.f32 %v1390, %v1395
        %v1400 = vadd.f32 %v1391, %v1395
        %v1401 = vadd.f32 %v1392, %v1395
        %v1402 = vadd.f32 %v1393, %v1395
        %v1403 = vadd.f32 %v1394, %v1395
        %vm1404 = vcmp.gt.f32.partialorder %v1396, 0.0
        %vm1405 = vcmp.gt.f32.partialorder %v1397, 0.0
        %vm1406 = vcmp.gt.f32.partialorder %v1398, 0.0
        %vm1407 = vcmp.gt.f32.partialorder %v1399, 0.0
        %vm1408 = vcmp.gt.f32.partialorder %v1400, 0.0
        %vm1409 = vcmp.gt.f32.partialorder %v1401, 0.0
        %vm1410 = vcmp.gt.f32.partialorder %v1402, 0.0
        %vm1411 = vcmp.gt.f32.partialorder %v1403, 0.0
        %s1412 = sld [smem:[#allocation2]]
        %v1413 = vstv %s1412
        %v1414 = vmul.f32 %v1413, %v1396
        %v1415 = vmul.f32 %v1413, %v1397
        %v1416 = vmul.f32 %v1413, %v1398
        %v1417 = vmul.f32 %v1413, %v1399
        %v1418 = vmul.f32 %v1413, %v1400
        %v1419 = vmul.f32 %v1413, %v1401
        %v1420 = vmul.f32 %v1413, %v1402
        %v1421 = vmul.f32 %v1413, %v1403
        %v1422 = vsel %vm1404, %v1396, %v1414
        %v1423 = vsel %vm1405, %v1397, %v1415
        %v1424 = vsel %vm1406, %v1398, %v1416
        %v1425 = vsel %vm1407, %v1399, %v1417
        %v1426 = vsel %vm1408, %v1400, %v1418
        %v1427 = vsel %vm1409, %v1401, %v1419
        %v1428 = vsel %vm1410, %v1402, %v1420
        %v1429 = vsel %vm1411, %v1403, %v1421
        %v1430 = vpack.c.bf16 %v1422, %v1422
        %v1431 = vpack.c.bf16 %v1423, %v1423
        %v1432 = vpack.c.bf16 %v1424, %v1424
        %v1433 = vpack.c.bf16 %v1425, %v1425
        %v1434 = vpack.c.bf16 %v1426, %v1426
        %v1435 = vpack.c.bf16 %v1427, %v1427
        %v1436 = vpack.c.bf16 %v1428, %v1428
        %v1437 = vpack.c.bf16 %v1429, %v1429
        %1438 = vst [vmem:[%s304] sm:$0xf] %v1430
        %1439 = vst [vmem:[%s304 + $0x4] sm:$0xf] %v1431
        %1440 = vst [vmem:[%s304 + $0x8] sm:$0xf] %v1432
        %1441 = vst [vmem:[%s304 + $0xc] sm:$0xf] %v1433
        %1442 = vst [vmem:[%s304 + $0x10] sm:$0xf] %v1434
        %1443 = vst [vmem:[%s304 + $0x14] sm:$0xf] %v1435
        %1444 = vst [vmem:[%s304 + $0x18] sm:$0xf] %v1436
        %1445 = vst [vmem:[%s304 + $0x1c] sm:$0xf] %v1437
        %v1446 = vld [vmem:[%s748] sm:$0xf]
        %v1447 = vld [vmem:[%s748 + $0x8] sm:$0xf]
        %v1448 = vld [vmem:[%s748 + $0x10] sm:$0xf]
        %v1449 = vld [vmem:[%s748 + $0x18] sm:$0xf]
        %v1450 = vld [vmem:[%s748 + $0x20] sm:$0xf]
        %v1451 = vld [vmem:[%s748 + $0x28] sm:$0xf]
        %v1452 = vld [vmem:[%s748 + $0x30] sm:$0xf]
        %v1453 = vld [vmem:[%s748 + $0x38] sm:$0xf]
        %v1454 = vld [vmem:[%s4] sm:$0x3]
        %v1463 = vunpack.c.l.b16 %v1446
        %v1464 = vunpack.c.l.b16 %v1447
        %v1465 = vunpack.c.l.b16 %v1448
        %v1466 = vunpack.c.l.b16 %v1449
        %v1467 = vunpack.c.l.b16 %v1450
        %v1468 = vunpack.c.l.b16 %v1451
        %v1469 = vunpack.c.l.b16 %v1452
        %v1470 = vunpack.c.l.b16 %v1453
        %v1471 = vpack.c.b16 %v1464, %v1463
        %v1472 = vpack.c.b16 %v1466, %v1465
        %v1473 = vpack.c.b16 %v1468, %v1467
        %v1474 = vpack.c.b16 %v1470, %v1469
        %v1476 = vsel %vm358, %v1471, 0
        %v1479 = vsel %vm358, %v1472, 0
        %v1482 = vsel %vm358, %v1473, 0
        %v1485 = vsel %vm358, %v1474, 0
        %v1488 = vsel %vm371, %v1454, 0
        %1490 = vmatpush.bf16.msra.mxu0 0
        %1491 = vmatpush.bf16.msra.mxu0 0
        %1492 = vmatpush.bf16.msra.mxu0 0
        %1493 = vmatpush.bf16.msra.mxu0 0
        %1494 = vmatpush.bf16.msra.mxu0 0
        %1495 = vmatpush.bf16.msra.mxu0 0
        %1496 = vmatpush.bf16.msra.mxu0 0
        %1497 = vmatpush.bf16.msra.mxu0 %v1488
        %1498 = vmatmul.bf16.gmra.mxu0 %v1476
        %v1499 = vpop.f32.mrf.mxu0
        %v1500 = vadd.f32 0.0, %v1499
        %v1501 = vpop.f32.mrf.mxu0
        %v1502 = vadd.f32 0.0, %v1501
        %1503 = vmatmul.bf16.gmra.mxu0 %v1479
        %v1504 = vpop.f32.mrf.mxu0
        %v1505 = vadd.f32 0.0, %v1504
        %v1506 = vpop.f32.mrf.mxu0
        %v1507 = vadd.f32 0.0, %v1506
        %1508 = vmatmul.bf16.gmra.mxu0 %v1482
        %v1509 = vpop.f32.mrf.mxu0
        %v1510 = vadd.f32 0.0, %v1509
        %v1511 = vpop.f32.mrf.mxu0
        %v1512 = vadd.f32 0.0, %v1511
        %1513 = vmatmul.bf16.gmra.mxu0 %v1485
        %v1514 = vpop.f32.mrf.mxu0
        %v1515 = vadd.f32 0.0, %v1514
        %v1516 = vpop.f32.mrf.mxu0
        %v1517 = vadd.f32 0.0, %v1516
        %1518 = vdwg.mxu0
        %v1519 = vld [vmem:[%s5] sm:$0x3]
        %v1520 = vperm.slane %v1519, 0
        %v1521 = vmul.f32 %v1500, %v1520
        %v1522 = vmul.f32 %v1502, %v1520
        %v1523 = vmul.f32 %v1505, %v1520
        %v1524 = vmul.f32 %v1507, %v1520
        %v1525 = vmul.f32 %v1510, %v1520
        %v1526 = vmul.f32 %v1512, %v1520
        %v1527 = vmul.f32 %v1515, %v1520
        %v1528 = vmul.f32 %v1517, %v1520
        %v1529 = vperm.slane %v1519, 1
        %v1530 = vadd.f32 %v1521, %v1529
        %v1531 = vadd.f32 %v1522, %v1529
        %v1532 = vadd.f32 %v1523, %v1529
        %v1533 = vadd.f32 %v1524, %v1529
        %v1534 = vadd.f32 %v1525, %v1529
        %v1535 = vadd.f32 %v1526, %v1529
        %v1536 = vadd.f32 %v1527, %v1529
        %v1537 = vadd.f32 %v1528, %v1529
        %vm1538 = vcmp.gt.f32.partialorder %v1530, 0.0
        %vm1539 = vcmp.gt.f32.partialorder %v1531, 0.0
        %vm1540 = vcmp.gt.f32.partialorder %v1532, 0.0
        %vm1541 = vcmp.gt.f32.partialorder %v1533, 0.0
        %vm1542 = vcmp.gt.f32.partialorder %v1534, 0.0
        %vm1543 = vcmp.gt.f32.partialorder %v1535, 0.0
        %vm1544 = vcmp.gt.f32.partialorder %v1536, 0.0
        %vm1545 = vcmp.gt.f32.partialorder %v1537, 0.0
        %s1546 = sld [smem:[#allocation3]]
        %v1547 = vstv %s1546
        %v1548 = vmul.f32 %v1547, %v1530
        %v1549 = vmul.f32 %v1547, %v1531
        %v1550 = vmul.f32 %v1547, %v1532
        %v1551 = vmul.f32 %v1547, %v1533
        %v1552 = vmul.f32 %v1547, %v1534
        %v1553 = vmul.f32 %v1547, %v1535
        %v1554 = vmul.f32 %v1547, %v1536
        %v1555 = vmul.f32 %v1547, %v1537
        %v1556 = vsel %vm1538, %v1530, %v1548
        %v1557 = vsel %vm1539, %v1531, %v1549
        %v1558 = vsel %vm1540, %v1532, %v1550
        %v1559 = vsel %vm1541, %v1533, %v1551
        %v1560 = vsel %vm1542, %v1534, %v1552
        %v1561 = vsel %vm1543, %v1535, %v1553
        %v1562 = vsel %vm1544, %v1536, %v1554
        %v1563 = vsel %vm1545, %v1537, %v1555
        %v1564 = vpack.c.bf16 %v1556, %v1556
        %v1565 = vpack.c.bf16 %v1557, %v1557
        %v1566 = vpack.c.bf16 %v1558, %v1558
        %v1567 = vpack.c.bf16 %v1559, %v1559
        %v1568 = vpack.c.bf16 %v1560, %v1560
        %v1569 = vpack.c.bf16 %v1561, %v1561
        %v1570 = vpack.c.bf16 %v1562, %v1562
        %v1571 = vpack.c.bf16 %v1563, %v1563
        %1572 = vst [vmem:[%s311] sm:$0xf] %v1564
        %1573 = vst [vmem:[%s311 + $0x4] sm:$0xf] %v1565
        %1574 = vst [vmem:[%s311 + $0x8] sm:$0xf] %v1566
        %1575 = vst [vmem:[%s311 + $0xc] sm:$0xf] %v1567
        %1576 = vst [vmem:[%s311 + $0x10] sm:$0xf] %v1568
        %1577 = vst [vmem:[%s311 + $0x14] sm:$0xf] %v1569
        %1578 = vst [vmem:[%s311 + $0x18] sm:$0xf] %v1570
        %1579 = vst [vmem:[%s311 + $0x1c] sm:$0xf] %v1571
        %s1580 = sand.u32 %s188, 1
        %s1581 = scalar_lea.sflag [#allocation5], %s1580
        %s1582 = sand.u32 %s188, 1
        %s1583 = smul.addr %s1582, 32
        %s1584 = scalar_lea.vmem [#allocation4], %s1583
        %s1585 = sand.u32 %s214, 1
        %s1586 = scalar_lea.sflag [#allocation7], %s1585
        %s1587 = sand.u32 %s214, 1
        %s1588 = smul.addr %s1587, 32
        %s1589 = scalar_lea.vmem [#allocation6], %s1588
        // Predicated region
        $region49: #{tpu_custom_call.1} parent=47 // pred_check
          %p1590 = pneg %p198
        $region50: #{tpu_custom_call.1} parent=47 // pred_check_branch
          %1592 = sbr.rel (%p1590) target = $region52
        $region51: #{tpu_custom_call.1} parent=47 // pred_region
          %1594 = vsyncadd %s1581, 0
          %s1595 = smul.addr %s28, 8
          %s1596 = smul.addr %s1595, 4
          %s1597 = scalar_lea.hbm %s7, %s1596
          %s1598 = sshll.u32 %s1584, 4
          %s1599 = int_to_ptr.vmem [resolvable:$true] %s1598
          %s1600 = sshll.u32 %s1597, 4
          %s1601 = int_to_ptr.hbm [resolvable:$true] %s1600
          %1606 = dma.vmem_to_hbm [thread:$0]  %s1599, 512, %s1601, %s1581, 64, 64, 4
        $region52: #{tpu_custom_call.1} parent=47 // pred_fallthru
          _
        // Predicated region
        $region53: #{tpu_custom_call.1} parent=47 // pred_check
          %p1607 = pneg %p224
        $region54: #{tpu_custom_call.1} parent=47 // pred_check_branch
          %1609 = sbr.rel (%p1607) target = $region56
        $region55: #{tpu_custom_call.1} parent=47 // pred_region
          %1611 = vsyncadd %s1586, 0
          %s1612 = smul.addr %s28, 8
          %s1613 = smul.addr %s1612, 4
          %s1614 = scalar_lea.hbm %s8, %s1613
          %s1615 = sshll.u32 %s1589, 4
          %s1616 = int_to_ptr.vmem [resolvable:$true] %s1615
          %s1617 = sshll.u32 %s1614, 4
          %s1618 = int_to_ptr.hbm [resolvable:$true] %s1617
          %1623 = dma.vmem_to_hbm [thread:$0]  %s1616, 512, %s1618, %s1586, 64, 64, 4
        $region56: #{tpu_custom_call.1} parent=47 // pred_fallthru
          _
      $region48: #{tpu_custom_call.1} parent=5 // pred_fallthru
        _
      %p1624 = scmp.le.s32.totalorder 2, %s23
      // Predicated region
      $region57: #{tpu_custom_call.1} parent=5 // pred_check
        %p1625 = pneg %p1624
      $region58: #{tpu_custom_call.1} parent=5 // pred_check_branch
        %1627 = sbr.rel (%p1625) target = $region60
      $region59: #{tpu_custom_call.1} parent=5 // pred_region
        %s1628 = ssub.s32 %s23, 2
        // Predicated region
        $region61: #{tpu_custom_call.1} parent=59 // pred_check
          %p1629 = pneg %p204
        $region62: #{tpu_custom_call.1} parent=59 // pred_check_branch
          %1631 = sbr.rel (%p1629) target = $region64
        $region63: #{tpu_custom_call.1} parent=59 // pred_region
          %s1632 = sand.u32 %s189, 1
          %s1633 = scalar_lea.sflag [#allocation5], %s1632
          %s1634 = sand.u32 %s189, 1
          %s1635 = smul.addr %s1634, 32
          %s1636 = scalar_lea.vmem [#allocation4], %s1635
          %1638 = dma.done %s1633, 512
        $region64: #{tpu_custom_call.1} parent=59 // pred_fallthru
          _
        // Predicated region
        $region65: #{tpu_custom_call.1} parent=59 // pred_check
          %p1639 = pneg %p230
        $region66: #{tpu_custom_call.1} parent=59 // pred_check_branch
          %1641 = sbr.rel (%p1639) target = $region68
        $region67: #{tpu_custom_call.1} parent=59 // pred_region
          %s1642 = sand.u32 %s215, 1
          %s1643 = scalar_lea.sflag [#allocation7], %s1642
          %s1644 = sand.u32 %s215, 1
          %s1645 = smul.addr %s1644, 32
          %s1646 = scalar_lea.vmem [#allocation6], %s1645
          %1648 = dma.done %s1643, 512
        $region68: #{tpu_custom_call.1} parent=59 // pred_fallthru
          _
      $region60: #{tpu_custom_call.1} parent=5 // pred_fallthru
        _
    $region6: #{tpu_custom_call.1} parent=1 // loop_footer
      %s27 = sadd.s32 1, %s23
    $region7: #{tpu_custom_call.1} parent=1 // loop_footer_branch
      %22 = sbr.rel target = $region3
    $region8: #{tpu_custom_call.1} parent=1 // loop_exit
      _
    %1649 = vsyncpa [#allocation5], 1
    %s1650 = scalar_lea.sflag [#allocation5], 1
    %1651 = vsyncpa %s1650, 1
    %1652 = vsyncpa [#allocation7], 1
    %s1653 = scalar_lea.sflag [#allocation7], 1
    %1654 = vsyncpa %s1653, 1

</llo_original>
